<compile_context>
chip_gen: v7x
topology: tpu7x:2x2x1
jax: 0.10.0
libtpu: 0.0.40
codegen_flags: <defaults>
</compile_context>

<pallas_src>
import functools

import jax
import jax.numpy as jnp
from jax import lax
from jax.experimental import pallas as pl
from jax.experimental.pallas import tpu as pltpu

EPS = 1e-5


def _round_up(x, m):
    return (x + m - 1) // m * m


# ----------------------------------------------------------------------------
# Fused Pallas kernel: (im2col matmul, bf16 in / f32 acc) + bias + LayerNorm
# ----------------------------------------------------------------------------
def _proj_ln_kernel(p_ref, w_ref, b_ref, g_ref, beta_ref, o_ref, *, eps, n_ch):
    # p_ref:    (TILE_M, K)      bf16  im2col patches for this row tile
    # w_ref:    (K, Co_pad)      bf16  conv weight, zero-padded channels
    # b_/g_/beta_ref: (1, Co_pad) f32  bias / LN gamma / LN beta (zero-padded)
    # o_ref:    (TILE_M, Co_pad) f32
    y = jnp.dot(p_ref[...], w_ref[...], preferred_element_type=jnp.float32)
    y = y + b_ref[...]

    # One-pass LayerNorm statistics over the channel axis.  Padded channels
    # are exactly 0 (zero weight columns + zero bias), so sum / sum-of-squares
    # divided by the *real* channel count n_ch gives the correct stats.
    inv_n = 1.0 / n_ch
    s1 = jnp.sum(y, axis=-1, keepdims=True)
    s2 = jnp.sum(y * y, axis=-1, keepdims=True)
    mean = s1 * inv_n
    var = jnp.maximum(s2 * inv_n - mean * mean, 0.0)
    inv_std = lax.rsqrt(var + eps)

    o_ref[...] = (y - mean) * inv_std * g_ref[...] + beta_ref[...]


def _fused_proj_layernorm(patches, w_mat, bias, gamma, beta, *, n_ch,
                          tile_m=512, eps=EPS):
    m_pad, k = patches.shape
    co_pad = w_mat.shape[1]
    grid_m = m_pad // tile_m
    kernel = functools.partial(_proj_ln_kernel, eps=eps, n_ch=float(n_ch))
    return pl.pallas_call(
        kernel,
        out_shape=jax.ShapeDtypeStruct((m_pad, co_pad), jnp.float32),
        grid=(grid_m,),
        in_specs=[
            pl.BlockSpec((tile_m, k), lambda i: (i, 0)),      # patches: tiled
            pl.BlockSpec((k, co_pad), lambda i: (0, 0)),      # weight: resident
            pl.BlockSpec((1, co_pad), lambda i: (0, 0)),      # bias
            pl.BlockSpec((1, co_pad), lambda i: (0, 0)),      # gamma
            pl.BlockSpec((1, co_pad), lambda i: (0, 0)),      # beta
        ],
        out_specs=pl.BlockSpec((tile_m, co_pad), lambda i: (i, 0)),
        compiler_params=pltpu.CompilerParams(
            dimension_semantics=("parallel",)),               # v7x: 2 TCs share rows
    )(patches, w_mat, bias, gamma, beta)


# ----------------------------------------------------------------------------
# Glue: im2col for a k x k / stride s / pad p convolution (NHWC input)
# ----------------------------------------------------------------------------
def _im2col(x_nhwc, ksize, stride, pad, out_h, out_w):
    n, h, w, c = x_nhwc.shape
    xp = jnp.pad(x_nhwc, ((0, 0), (pad, pad), (pad, pad), (0, 0)))
    taps = []
    for dh in range(ksize):
        for dw in range(ksize):
            taps.append(xp[:, dh:dh + stride * out_h:stride,
                           dw:dw + stride * out_w:stride, :])
    # (N, Ho, Wo, k*k, C) -> (N*Ho*Wo, k*k*C); (dh, dw, c) ordering matches the
    # (kh, kw, Cin, Cout).reshape(k*k*Cin, Cout) weight layout.
    patches = jnp.stack(taps, axis=-2)
    return patches.reshape(n * out_h * out_w, ksize * ksize * c)


# ----------------------------------------------------------------------------
# OverlapPatchEmbed forward (NCHW in, (N, Ho*Wo, E) out, like the module)
# ----------------------------------------------------------------------------
def overlap_patch_embed_forward(x_nchw, params, *, patch_size=7, stride=4,
                                tile_m=512, eps=EPS):
    w_hwio, bias, gamma, beta = params
    kh, kw, cin, co = w_hwio.shape
    pad = patch_size // 2
    n, _, h, w = x_nchw.shape
    ho = (h + 2 * pad - kh) // stride + 1
    wo = (w + 2 * pad - kw) // stride + 1

    # NCHW -> NHWC (channels on lanes) and bf16 for the MXU / lighter im2col.
    x_nhwc = jnp.transpose(x_nchw, (0, 2, 3, 1)).astype(jnp.bfloat16)
    patches = _im2col(x_nhwc, kh, stride, pad, ho, wo)         # (M, K) bf16
    m, k = patches.shape

    # Tile M (pad rows to a tile multiple); pad channels to a lane-dense 128x.
    tile_m = min(tile_m, _round_up(m, 8))
    m_pad = _round_up(m, tile_m)
    co_pad = _round_up(co, 128)
    patches = jnp.pad(patches, ((0, m_pad - m), (0, 0)))
    w_mat = jnp.pad(w_hwio.reshape(kh * kw * cin, co).astype(jnp.bfloat16),
                    ((0, 0), (0, co_pad - co)))
    b2 = jnp.pad(bias.astype(jnp.float32).reshape(1, co), ((0, 0), (0, co_pad - co)))
    g2 = jnp.pad(gamma.astype(jnp.float32).reshape(1, co), ((0, 0), (0, co_pad - co)))
    be2 = jnp.pad(beta.astype(jnp.float32).reshape(1, co), ((0, 0), (0, co_pad - co)))

    out = _fused_proj_layernorm(patches, w_mat, b2, g2, be2,
                                n_ch=co, tile_m=tile_m, eps=eps)
    tokens = out[:m, :co].reshape(n, ho * wo, co)
    return tokens, ho, wo


# ----------------------------------------------------------------------------
# Deterministic parameter init (shapes from nn.Conv2d / nn.LayerNorm).
# The module's own init zeroes the conv bias and sets LayerNorm to (1, 0);
# small random values are used here so those code paths are actually tested.
# ----------------------------------------------------------------------------
def init_params(key, in_chans, embed_dim, patch_size=7):
    k1, k2, k3, k4 = jax.random.split(key, 4)
    fan_out = patch_size * patch_size * embed_dim
    w = jax.random.normal(k1, (patch_size, patch_size, in_chans, embed_dim),
                          jnp.float32) * jnp.sqrt(2.0 / fan_out)
    b = 0.05 * jax.random.normal(k2, (embed_dim,), jnp.float32)
    gamma = 1.0 + 0.1 * jax.random.normal(k3, (embed_dim,), jnp.float32)
    beta = 0.05 * jax.random.normal(k4, (embed_dim,), jnp.float32)
    return (w, b, gamma, beta)


# ----------------------------------------------------------------------------
# Pure-JAX reference (PyTorch semantics).  quantize_inputs=True applies the
# same bf16 rounding to x / w that the kernel's MXU path uses, for a tight
# numerical comparison; False compares against the full-f32 math.
# ----------------------------------------------------------------------------
def _reference_forward(x_nchw, params, *, stride, pad, eps=EPS,
                       quantize_inputs=False):
    w_hwio, bias, gamma, beta = params
    x = x_nchw.astype(jnp.float32)
    wf = w_hwio.astype(jnp.float32)
    if quantize_inputs:
        x = x.astype(jnp.bfloat16).astype(jnp.float32)
        wf = wf.astype(jnp.bfloat16).astype(jnp.float32)
    w_oihw = jnp.transpose(wf, (3, 2, 0, 1))                   # (Cout, Cin, kh, kw)
    y = lax.conv_general_dilated(
        x, w_oihw, window_strides=(stride, stride),
        padding=((pad, pad), (pad, pad)),
        dimension_numbers=("NCHW", "OIHW", "NCHW"),
        precision=lax.Precision.HIGHEST,
    ) + bias[None, :, None, None]
    n, co, ho, wo = y.shape
    tokens = jnp.transpose(y.reshape(n, co, ho * wo), (0, 2, 1))  # (N, T, Co)
    mean = jnp.mean(tokens, axis=-1, keepdims=True)
    var = jnp.mean(jnp.square(tokens - mean), axis=-1, keepdims=True)
    out = (tokens - mean) * lax.rsqrt(var + eps) * gamma + beta
    return out, ho, wo


if __name__ == "__main__":
    key = jax.random.PRNGKey(0)
    k_x, k_p = jax.random.split(key)

    # Small but non-trivial: M = N*Ho*Wo = 4*16*16 = 1024 rows -> grid of 2
    # row tiles at TILE_M=512; embed_dim=128 is already lane-dense.
    N, IN_CHANS, IMG, PATCH, STRIDE, EMBED = 4, 3, 64, 7, 4, 128
    x = jax.random.normal(k_x, (N, IN_CHANS, IMG, IMG), jnp.float32)
    params = init_params(k_p, IN_CHANS, EMBED, PATCH)

    out, ho, wo = overlap_patch_embed_forward(x, params,
                                              patch_size=PATCH, stride=STRIDE)
    out = jax.block_until_ready(out)
    assert out.shape == (N, ho * wo, EMBED), out.shape
    assert (ho, wo) == (IMG // STRIDE, IMG // STRIDE), (ho, wo)

    # Tight check vs a reference using the same bf16 input quantization.
    ref_q, rh, rw = _reference_forward(x, params, stride=STRIDE,
                                       pad=PATCH // 2, quantize_inputs=True)
    ref_q = jax.block_until_ready(ref_q)
    assert (rh, rw) == (ho, wo)
    err_q = float(jnp.max(jnp.abs(out - ref_q)))
    assert err_q < 1e-3, err_q

    # Sanity check vs the full-f32 reference (bf16 MXU inputs cost ~1e-2 abs).
    ref_f, _, _ = _reference_forward(x, params, stride=STRIDE,
                                     pad=PATCH // 2, quantize_inputs=False)
    err_f = float(jnp.max(jnp.abs(out - jax.block_until_ready(ref_f))))
    assert err_f < 6e-2, err_f

    print("KERNEL_OK")
</pallas_src>

<mosaic_0001>
module attributes {stable_mosaic.version = 11 : i64} {
  func.func @_proj_ln_kernel(%arg0: i32, %arg1: memref<512x147xbf16, #tpu.memory_space<vmem>>, %arg2: memref<147x128xbf16, #tpu.memory_space<vmem>>, %arg3: memref<1x128xf32, #tpu.memory_space<vmem>>, %arg4: memref<1x128xf32, #tpu.memory_space<vmem>>, %arg5: memref<1x128xf32, #tpu.memory_space<vmem>>, %arg6: memref<512x128xf32, #tpu.memory_space<vmem>>) attributes {dimension_semantics = [#tpu.dimension_semantics<parallel>], iteration_bounds = array<i64: 2>, scalar_prefetch = 0 : i64, scratch_operands = 0 : i64, tpu.core_type = #tpu.core_type<tc>, window_params = [{transform_indices = @transform_0, window_bounds = array<i64: 512, 147>}, {pipeline_mode = #tpu.pipeline_mode<synchronous>, transform_indices = @transform_1, window_bounds = array<i64: 147, 128>}, {pipeline_mode = #tpu.pipeline_mode<synchronous>, transform_indices = @transform_2, window_bounds = array<i64: 1, 128>}, {pipeline_mode = #tpu.pipeline_mode<synchronous>, transform_indices = @transform_3, window_bounds = array<i64: 1, 128>}, {pipeline_mode = #tpu.pipeline_mode<synchronous>, transform_indices = @transform_4, window_bounds = array<i64: 1, 128>}, {transform_indices = @transform_5, window_bounds = array<i64: 512, 128>}]} {
    %c0 = arith.constant 0 : index
    %c0_0 = arith.constant 0 : index
    %0 = vector.load %arg1[%c0, %c0_0] : memref<512x147xbf16, #tpu.memory_space<vmem>>, vector<512x147xbf16>
    %c0_1 = arith.constant 0 : index
    %c0_2 = arith.constant 0 : index
    %1 = vector.load %arg2[%c0_1, %c0_2] : memref<147x128xbf16, #tpu.memory_space<vmem>>, vector<147x128xbf16>
    %cst = arith.constant dense<0.000000e+00> : vector<512x128xf32>
    %2 = tpu.matmul %0, %1, %cst {dimension_numbers = #tpu.dot_dimension_numbers<[1], [0], [0], [1], [0, 0, 1, 1], [], []>} : vector<512x147xbf16>, vector<147x128xbf16>, vector<512x128xf32> -> vector<512x128xf32>
    %c0_3 = arith.constant 0 : index
    %c0_4 = arith.constant 0 : index
    %3 = vector.load %arg3[%c0_3, %c0_4] : memref<1x128xf32, #tpu.memory_space<vmem>>, vector<1x128xf32>
    %4 = vector.broadcast %3 : vector<1x128xf32> to vector<512x128xf32>
    %5 = arith.addf %2, %4 : vector<512x128xf32>
    %cst_5 = arith.constant dense<0.000000e+00> : vector<512xf32>
    %6 = vector.multi_reduction <add>, %5, %cst_5 [1] : vector<512x128xf32> to vector<512xf32>
    %7 = vector.shape_cast %6 : vector<512xf32> to vector<512x1xf32>
    %8 = arith.mulf %5, %5 : vector<512x128xf32>
    %cst_6 = arith.constant dense<0.000000e+00> : vector<512xf32>
    %9 = vector.multi_reduction <add>, %8, %cst_6 [1] : vector<512x128xf32> to vector<512xf32>
    %10 = vector.shape_cast %9 : vector<512xf32> to vector<512x1xf32>
    %cst_7 = arith.constant 7.812500e-03 : f32
    %11 = vector.broadcast %cst_7 : f32 to vector<512x1xf32>
    %12 = arith.mulf %7, %11 : vector<512x1xf32>
    %cst_8 = arith.constant 7.812500e-03 : f32
    %13 = vector.broadcast %cst_8 : f32 to vector<512x1xf32>
    %14 = arith.mulf %10, %13 : vector<512x1xf32>
    %15 = arith.mulf %12, %12 : vector<512x1xf32>
    %16 = arith.subf %14, %15 : vector<512x1xf32>
    %cst_9 = arith.constant 0.000000e+00 : f32
    %17 = vector.broadcast %cst_9 : f32 to vector<512x1xf32>
    %18 = arith.maximumf %16, %17 : vector<512x1xf32>
    %cst_10 = arith.constant 9.99999974E-6 : f32
    %19 = vector.broadcast %cst_10 : f32 to vector<512x1xf32>
    %20 = arith.addf %18, %19 : vector<512x1xf32>
    %21 = math.rsqrt %20 : vector<512x1xf32>
    %22 = vector.broadcast %12 : vector<512x1xf32> to vector<512x128xf32>
    %23 = arith.subf %5, %22 : vector<512x128xf32>
    %24 = vector.broadcast %21 : vector<512x1xf32> to vector<512x128xf32>
    %25 = arith.mulf %23, %24 : vector<512x128xf32>
    %c0_11 = arith.constant 0 : index
    %c0_12 = arith.constant 0 : index
    %26 = vector.load %arg4[%c0_11, %c0_12] : memref<1x128xf32, #tpu.memory_space<vmem>>, vector<1x128xf32>
    %27 = vector.broadcast %26 : vector<1x128xf32> to vector<512x128xf32>
    %28 = arith.mulf %25, %27 : vector<512x128xf32>
    %c0_13 = arith.constant 0 : index
    %c0_14 = arith.constant 0 : index
    %29 = vector.load %arg5[%c0_13, %c0_14] : memref<1x128xf32, #tpu.memory_space<vmem>>, vector<1x128xf32>
    %30 = vector.broadcast %29 : vector<1x128xf32> to vector<512x128xf32>
    %31 = arith.addf %28, %30 : vector<512x128xf32>
    %c0_15 = arith.constant 0 : index
    %c0_16 = arith.constant 0 : index
    %32 = vector.load %arg6[%c0_15, %c0_16] : memref<512x128xf32, #tpu.memory_space<vmem>>, vector<512x128xf32>
    tpu.vector_store %arg6[%c0_15, %c0_16], %31 {strides = array<i32>} : memref<512x128xf32, #tpu.memory_space<vmem>>, vector<512x128xf32>,
    return
  }
  func.func @transform_0(%arg0: i32) -> (i32, i32) {
    %c0_i32 = arith.constant 0 : i32
    %c0_i32_0 = arith.constant 0 : i32
    return %arg0, %c0_i32 : i32, i32
  }
  func.func @transform_1(%arg0: i32) -> (i32, i32) {
    %c0_i32 = arith.constant 0 : i32
    %c0_i32_0 = arith.constant 0 : i32
    %c0_i32_1 = arith.constant 0 : i32
    return %c0_i32, %c0_i32_0 : i32, i32
  }
  func.func @transform_2(%arg0: i32) -> (i32, i32) {
    %c0_i32 = arith.constant 0 : i32
    %c0_i32_0 = arith.constant 0 : i32
    %c0_i32_1 = arith.constant 0 : i32
    return %c0_i32, %c0_i32_0 : i32, i32
  }
  func.func @transform_3(%arg0: i32) -> (i32, i32) {
    %c0_i32 = arith.constant 0 : i32
    %c0_i32_0 = arith.constant 0 : i32
    %c0_i32_1 = arith.constant 0 : i32
    return %c0_i32, %c0_i32_0 : i32, i32
  }
  func.func @transform_4(%arg0: i32) -> (i32, i32) {
    %c0_i32 = arith.constant 0 : i32
    %c0_i32_0 = arith.constant 0 : i32
    %c0_i32_1 = arith.constant 0 : i32
    return %c0_i32, %c0_i32_0 : i32, i32
  }
  func.func @transform_5(%arg0: i32) -> (i32, i32) {
    %c0_i32 = arith.constant 0 : i32
    %c0_i32_0 = arith.constant 0 : i32
    return %arg0, %c0_i32 : i32, i32
  }
}

</mosaic_0001>

<llo_original>
// kernel: tpu_custom_call.1
$region0: #{tpu_custom_call.1}
  #allocation0 [shape = 'u32[]', space=smem, size = 0x4, offset = 0x4, fixed_abs, tag = 'smem constant byte address 0x4 - core index']
  #allocation1 [shape = 'u32[144,128]{1,0:T(1,128)}', space=vmem, size = 0x12000, scoped, tag = 'internal scratch']
  %s0 = inlined_call_operand.vmem [shape: bf16[1024,147], index: 0, kind: input, shape index: {}]
  %s1 = inlined_call_operand.vmem [shape: bf16[147,128], index: 1, kind: input, shape index: {}]
  %s2 = inlined_call_operand.vmem [shape: f32[1,128], index: 2, kind: input, shape index: {}]
  %s3 = inlined_call_operand.vmem [shape: f32[1,128], index: 3, kind: input, shape index: {}]
  %s4 = inlined_call_operand.vmem [shape: f32[1,128], index: 4, kind: input, shape index: {}]
  %s5 = inlined_call_operand.hbm [shape: f32[1024,128], index: 5, kind: output, shape index: {}]
  %s6 = sld [smem:[#allocation0]]
  $region53: #{tpu_custom_call.1} parent=0
    _
  %s8 = ssub.s32 1, %s6
  %s9 = scalar_select 0, %s8, %s6
  $region1: #{tpu_custom_call.1} parent=0
    #allocation2 [shape = 'u8[524288]{0}', space=vmem, size = 0x80000, scoped, tag = 'output window, operand 0']
    #allocation3 [shape = 's32[2]{0}', space=sflag, size = 0x8, scoped, tag = 'scoped memory for tpu_custom_call.1']
    %10 = vsyncpa [#allocation3], 0
    %s11 = scalar_lea.sflag [#allocation3], 1
    %12 = vsyncpa %s11, 0
    loop: start=0, step=1, limit=4
    $region2: #{tpu_custom_call.1} parent=1 // loop_pre_header
      _
    $region3: #{tpu_custom_call.1} parent=1 // loop_header
      %s14 = sphi 0, %s18
      %p15 = scmp.ge.s32.totalorder %s14, 4
      %s24 = sphi 0, %s26
      %s27 = sphi 0, %s24
      %s28 = sphi 0, %s27
      %s44 = sphi 0, %s28
      %s48 = sphi 0, %s48
      %s50 = sphi 0, %s48
      %s51 = sphi 0, %s50
      %s65 = sphi 0, %s51
      %s69 = sphi 0, %s69
      %s71 = sphi 0, %s69
      %s72 = sphi 0, %s71
      %s86 = sphi 0, %s72
      %s90 = sphi 0, %s90
      %s92 = sphi 0, %s90
      %s93 = sphi 0, %s92
      %s107 = sphi 0, %s93
      %s111 = sphi 0, %s111
      %s113 = sphi 0, %s111
      %s114 = sphi 0, %s113
      %s128 = sphi 0, %s114
      %s134 = sphi 0, %s136
      %s137 = sphi 0, %s134
      %s138 = sphi 0, %s137
      %s154 = sphi 0, %s138
    $region4: #{tpu_custom_call.1} parent=1 // loop_header_branch
      %17 = sbr.rel (%p15) target = $region8
    $region5: #{tpu_custom_call.1} parent=1 // loop_body
      %s19 = ssub.s32 %s14, 1
      %s20 = ssub.s32 %s14, 2
      %s21 = sadd.s32 %s14, 1
      %s22 = ssub.s32 %s14, %s21
      %p23 = scmp.eq.s32.totalorder %s22, 0
      %s25 = sadd.s32 %s24, 1
      %s26 = scalar_select %p23, %s24, %s25
      %p29 = pneg %p23
      %p30 = scmp.eq.s32.totalorder %s14, 1
      %p31 = por %p29, %p30
      %p32 = scmp.ne.s32.totalorder %s24, %s27
      %p33 = scmp.eq.s32.totalorder %s14, 0
      %p34 = por %p32, %p33
      %p35 = scmp.ne.s32.totalorder %s24, %s27
      %p36 = scmp.eq.s32.totalorder %s19, 1
      %p37 = por %p35, %p36
      %p38 = scmp.ne.s32.totalorder %s27, %s28
      %p39 = scmp.eq.s32.totalorder %s19, 0
      %p40 = por %p38, %p39
      %p41 = scmp.ne.s32.totalorder %s27, %s28
      %p42 = scmp.eq.s32.totalorder %s20, 1
      %p43 = por %p41, %p42
      %p45 = scmp.ne.s32.totalorder %s28, %s44
      %p46 = scmp.eq.s32.totalorder %s20, 0
      %p47 = por %p45, %p46
      %s49 = sadd.s32 %s48, 1
      %p52 = scmp.eq.s32.totalorder %s14, 1
      %p53 = scmp.ne.s32.totalorder %s48, %s50
      %p54 = scmp.eq.s32.totalorder %s14, 0
      %p55 = por %p53, %p54
      %p56 = scmp.ne.s32.totalorder %s48, %s50
      %p57 = scmp.eq.s32.totalorder %s19, 1
      %p58 = por %p56, %p57
      %p59 = scmp.ne.s32.totalorder %s50, %s51
      %p60 = scmp.eq.s32.totalorder %s19, 0
      %p61 = por %p59, %p60
      %p62 = scmp.ne.s32.totalorder %s50, %s51
      %p63 = scmp.eq.s32.totalorder %s20, 1
      %p64 = por %p62, %p63
      %p66 = scmp.ne.s32.totalorder %s51, %s65
      %p67 = scmp.eq.s32.totalorder %s20, 0
      %p68 = por %p66, %p67
      %s70 = sadd.s32 %s69, 1
      %p73 = scmp.eq.s32.totalorder %s14, 1
      %p74 = scmp.ne.s32.totalorder %s69, %s71
      %p75 = scmp.eq.s32.totalorder %s14, 0
      %p76 = por %p74, %p75
      %p77 = scmp.ne.s32.totalorder %s69, %s71
      %p78 = scmp.eq.s32.totalorder %s19, 1
      %p79 = por %p77, %p78
      %p80 = scmp.ne.s32.totalorder %s71, %s72
      %p81 = scmp.eq.s32.totalorder %s19, 0
      %p82 = por %p80, %p81
      %p83 = scmp.ne.s32.totalorder %s71, %s72
      %p84 = scmp.eq.s32.totalorder %s20, 1
      %p85 = por %p83, %p84
      %p87 = scmp.ne.s32.totalorder %s72, %s86
      %p88 = scmp.eq.s32.totalorder %s20, 0
      %p89 = por %p87, %p88
      %s91 = sadd.s32 %s90, 1
      %p94 = scmp.eq.s32.totalorder %s14, 1
      %p95 = scmp.ne.s32.totalorder %s90, %s92
      %p96 = scmp.eq.s32.totalorder %s14, 0
      %p97 = por %p95, %p96
      %p98 = scmp.ne.s32.totalorder %s90, %s92
      %p99 = scmp.eq.s32.totalorder %s19, 1
      %p100 = por %p98, %p99
      %p101 = scmp.ne.s32.totalorder %s92, %s93
      %p102 = scmp.eq.s32.totalorder %s19, 0
      %p103 = por %p101, %p102
      %p104 = scmp.ne.s32.totalorder %s92, %s93
      %p105 = scmp.eq.s32.totalorder %s20, 1
      %p106 = por %p104, %p105
      %p108 = scmp.ne.s32.totalorder %s93, %s107
      %p109 = scmp.eq.s32.totalorder %s20, 0
      %p110 = por %p108, %p109
      %s112 = sadd.s32 %s111, 1
      %p115 = scmp.eq.s32.totalorder %s14, 1
      %p116 = scmp.ne.s32.totalorder %s111, %s113
      %p117 = scmp.eq.s32.totalorder %s14, 0
      %p118 = por %p116, %p117
      %p119 = scmp.ne.s32.totalorder %s111, %s113
      %p120 = scmp.eq.s32.totalorder %s19, 1
      %p121 = por %p119, %p120
      %p122 = scmp.ne.s32.totalorder %s113, %s114
      %p123 = scmp.eq.s32.totalorder %s19, 0
      %p124 = por %p122, %p123
      %p125 = scmp.ne.s32.totalorder %s113, %s114
      %p126 = scmp.eq.s32.totalorder %s20, 1
      %p127 = por %p125, %p126
      %p129 = scmp.ne.s32.totalorder %s114, %s128
      %p130 = scmp.eq.s32.totalorder %s20, 0
      %p131 = por %p129, %p130
      %s132 = ssub.s32 %s14, %s21
      %p133 = scmp.eq.s32.totalorder %s132, 0
      %s135 = sadd.s32 %s134, 1
      %s136 = scalar_select %p133, %s134, %s135
      %p139 = pneg %p133
      %p140 = scmp.eq.s32.totalorder %s14, 1
      %p141 = por %p139, %p140
      %p142 = scmp.ne.s32.totalorder %s134, %s137
      %p143 = scmp.eq.s32.totalorder %s14, 0
      %p144 = por %p142, %p143
      %p145 = scmp.ne.s32.totalorder %s134, %s137
      %p146 = scmp.eq.s32.totalorder %s19, 1
      %p147 = por %p145, %p146
      %p148 = scmp.ne.s32.totalorder %s137, %s138
      %p149 = scmp.eq.s32.totalorder %s19, 0
      %p150 = por %p148, %p149
      %p151 = scmp.ne.s32.totalorder %s137, %s138
      %p152 = scmp.eq.s32.totalorder %s20, 1
      %p153 = por %p151, %p152
      %p155 = scmp.ne.s32.totalorder %s138, %s154
      %p156 = scmp.eq.s32.totalorder %s20, 0
      %p157 = por %p155, %p156
      %p158 = scmp.le.s32.totalorder 1, %s14
      %p159 = scmp.lt.s32.totalorder %s14, 3
      %p160 = pnand %p158, %p159
      %p161 = pneg %p160
      // Predicated region
      $region9: #{tpu_custom_call.1} parent=5 // pred_check
        _
      $region10: #{tpu_custom_call.1} parent=5 // pred_check_branch
        %163 = sbr.rel (%p160) target = $region12
      $region11: #{tpu_custom_call.1} parent=5 // pred_region
        %s164 = ssub.s32 %s14, 1
        // Predicated region
        $region13: #{tpu_custom_call.1} parent=11 // pred_check
          %p165 = pneg %p61
        $region14: #{tpu_custom_call.1} parent=11 // pred_check_branch
          %167 = sbr.rel (%p165) target = $region16
        $region15: #{tpu_custom_call.1} parent=11 // pred_region
          _
        $region16: #{tpu_custom_call.1} parent=11 // pred_fallthru
          _
        // Predicated region
        $region17: #{tpu_custom_call.1} parent=11 // pred_check
          %p168 = pneg %p82
        $region18: #{tpu_custom_call.1} parent=11 // pred_check_branch
          %170 = sbr.rel (%p168) target = $region20
        $region19: #{tpu_custom_call.1} parent=11 // pred_region
          _
        $region20: #{tpu_custom_call.1} parent=11 // pred_fallthru
          _
        // Predicated region
        $region21: #{tpu_custom_call.1} parent=11 // pred_check
          %p171 = pneg %p103
        $region22: #{tpu_custom_call.1} parent=11 // pred_check_branch
          %173 = sbr.rel (%p171) target = $region24
        $region23: #{tpu_custom_call.1} parent=11 // pred_region
          _
        $region24: #{tpu_custom_call.1} parent=11 // pred_fallthru
          _
        // Predicated region
        $region25: #{tpu_custom_call.1} parent=11 // pred_check
          %p174 = pneg %p124
        $region26: #{tpu_custom_call.1} parent=11 // pred_check_branch
          %176 = sbr.rel (%p174) target = $region28
        $region27: #{tpu_custom_call.1} parent=11 // pred_region
          _
        $region28: #{tpu_custom_call.1} parent=11 // pred_fallthru
          _
      $region12: #{tpu_custom_call.1} parent=5 // pred_fallthru
        _
      %p177 = scmp.lt.s32.totalorder %s14, 2
      // Predicated region
      $region29: #{tpu_custom_call.1} parent=5 // pred_check
        %p178 = pneg %p177
      $region30: #{tpu_custom_call.1} parent=5 // pred_check_branch
        %180 = sbr.rel (%p178) target = $region32
      $region31: #{tpu_custom_call.1} parent=5 // pred_region
        // Predicated region
        $region33: #{tpu_custom_call.1} parent=31 // pred_check
          %p181 = pneg %p34
        $region34: #{tpu_custom_call.1} parent=31 // pred_check_branch
          %183 = sbr.rel (%p181) target = $region36
        $region35: #{tpu_custom_call.1} parent=31 // pred_region
          %s184 = smul.u32 64, %s14
          %p185 = scmp.lt.s32.totalorder %s184, 127
          %s186 = scalar_select %p185, %s184, 127
          %s187 = smul.addr %s186, 2
          %s188 = smul.addr %s187, 4
          %s189 = scalar_lea.vmem %s0, %s188
          %s190 = smul.u32 64, %s14
        $region36: #{tpu_custom_call.1} parent=31 // pred_fallthru
          _
      $region32: #{tpu_custom_call.1} parent=5 // pred_fallthru
        _
      %p191 = scmp.le.s32.totalorder 1, %s14
      %p192 = scmp.lt.s32.totalorder %s14, 3
      %p193 = pnand %p191, %p192
      %p194 = pneg %p193
      // Predicated region
      $region37: #{tpu_custom_call.1} parent=5 // pred_check
        _
      $region38: #{tpu_custom_call.1} parent=5 // pred_check_branch
        %196 = sbr.rel (%p193) target = $region40
      $region39: #{tpu_custom_call.1} parent=5 // pred_region
        %s197 = ssub.s32 %s14, 1
        %s198 = smul.u32 64, %s19
        %p199 = scmp.lt.s32.totalorder %s198, 127
        %s200 = scalar_select %p199, %s198, 127
        %s201 = smul.addr %s200, 2
        %s202 = smul.addr %s201, 4
        %s203 = scalar_lea.vmem %s0, %s202
        %p204 = pneg %p40
        %p205 = pneg %p37
        %p206 = pneg %p61
        %p207 = pneg %p58
        %p208 = pneg %p82
        %p209 = pneg %p79
        %p210 = pneg %p103
        %p211 = pneg %p100
        %p212 = pneg %p124
        %p213 = pneg %p121
        %p214 = pneg %p150
        %p215 = pneg %p147
        %s216 = sand.u32 %s137, 1
        %s217 = scalar_lea.sflag [#allocation3], %s216
        %s218 = sand.u32 %s137, 1
        %s219 = smul.addr %s218, 512
        %s220 = scalar_lea.vmem [#allocation2], %s219
        %s221 = smul.u32 64, %s19
        %p222 = scmp.lt.s32.totalorder %s221, 127
        %s223 = scalar_select %p222, %s221, 127
        %s224 = smul.addr %s223, 2
        %s225 = smul.addr %s224, 4
        %s226 = scalar_lea.vmem %s0, %s225
        %s227 = smul.u32 64, %s19
        %s228 = smul.u32 64, %s19
        %v230 = vld [vmem:[%s226] sm:$0xff]
        %v231 = vld [vmem:[%s226 + $0x8] sm:$0xff]
        %v232 = vld [vmem:[%s226 + $0x10] sm:$0xff]
        %v233 = vld [vmem:[%s226 + $0x18] sm:$0xff]
        %v234 = vld [vmem:[%s226 + $0x20] sm:$0xff]
        %v235 = vld [vmem:[%s226 + $0x28] sm:$0xff]
        %v236 = vld [vmem:[%s226 + $0x30] sm:$0xff]
        %v237 = vld [vmem:[%s226 + $0x38] sm:$0xff]
        %v238 = vld [vmem:[%s226 + $0x40] sm:$0xff]
        %v239 = vld [vmem:[%s226 + $0x48] sm:$0xff]
        %v240 = vld [vmem:[%s226 + $0x50] sm:$0xff]
        %v241 = vld [vmem:[%s226 + $0x58] sm:$0xff]
        %v242 = vld [vmem:[%s226 + $0x60] sm:$0xff]
        %v243 = vld [vmem:[%s226 + $0x68] sm:$0xff]
        %v244 = vld [vmem:[%s226 + $0x70] sm:$0xff]
        %v245 = vld [vmem:[%s226 + $0x78] sm:$0xff]
        %v246 = vld [vmem:[%s226 + $0x80] sm:$0xff]
        %v247 = vld [vmem:[%s226 + $0x88] sm:$0xff]
        %v248 = vld [vmem:[%s226 + $0x90] sm:$0xff]
        %v249 = vld [vmem:[%s226 + $0x98] sm:$0xff]
        %v250 = vld [vmem:[%s226 + $0xa0] sm:$0xff]
        %v251 = vld [vmem:[%s226 + $0xa8] sm:$0xff]
        %v252 = vld [vmem:[%s226 + $0xb0] sm:$0xff]
        %v253 = vld [vmem:[%s226 + $0xb8] sm:$0xff]
        %v254 = vld [vmem:[%s226 + $0xc0] sm:$0xff]
        %v255 = vld [vmem:[%s226 + $0xc8] sm:$0xff]
        %v256 = vld [vmem:[%s226 + $0xd0] sm:$0xff]
        %v257 = vld [vmem:[%s226 + $0xd8] sm:$0xff]
        %v258 = vld [vmem:[%s226 + $0xe0] sm:$0xff]
        %v259 = vld [vmem:[%s226 + $0xe8] sm:$0xff]
        %v260 = vld [vmem:[%s226 + $0xf0] sm:$0xff]
        %v261 = vld [vmem:[%s226 + $0xf8] sm:$0xff]
        %v262 = vld [vmem:[%s226 + $0x100] sm:$0xff]
        %v263 = vld [vmem:[%s226 + $0x108] sm:$0xff]
        %v264 = vld [vmem:[%s226 + $0x110] sm:$0xff]
        %v265 = vld [vmem:[%s226 + $0x118] sm:$0xff]
        %v266 = vld [vmem:[%s226 + $0x120] sm:$0xff]
        %v267 = vld [vmem:[%s226 + $0x128] sm:$0xff]
        %v268 = vld [vmem:[%s226 + $0x130] sm:$0xff]
        %v269 = vld [vmem:[%s226 + $0x138] sm:$0xff]
        %v270 = vld [vmem:[%s226 + $0x140] sm:$0xff]
        %v271 = vld [vmem:[%s226 + $0x148] sm:$0xff]
        %v272 = vld [vmem:[%s226 + $0x150] sm:$0xff]
        %v273 = vld [vmem:[%s226 + $0x158] sm:$0xff]
        %v274 = vld [vmem:[%s226 + $0x160] sm:$0xff]
        %v275 = vld [vmem:[%s226 + $0x168] sm:$0xff]
        %v276 = vld [vmem:[%s226 + $0x170] sm:$0xff]
        %v277 = vld [vmem:[%s226 + $0x178] sm:$0xff]
        %v278 = vld [vmem:[%s226 + $0x180] sm:$0xff]
        %v279 = vld [vmem:[%s226 + $0x188] sm:$0xff]
        %v280 = vld [vmem:[%s226 + $0x190] sm:$0xff]
        %v281 = vld [vmem:[%s226 + $0x198] sm:$0xff]
        %v282 = vld [vmem:[%s226 + $0x1a0] sm:$0xff]
        %v283 = vld [vmem:[%s226 + $0x1a8] sm:$0xff]
        %v284 = vld [vmem:[%s226 + $0x1b0] sm:$0xff]
        %v285 = vld [vmem:[%s226 + $0x1b8] sm:$0xff]
        %v286 = vld [vmem:[%s226 + $0x1c0] sm:$0xff]
        %v287 = vld [vmem:[%s226 + $0x1c8] sm:$0xff]
        %v288 = vld [vmem:[%s226 + $0x1d0] sm:$0xff]
        %v289 = vld [vmem:[%s226 + $0x1d8] sm:$0xff]
        %v290 = vld [vmem:[%s226 + $0x1e0] sm:$0xff]
        %v291 = vld [vmem:[%s226 + $0x1e8] sm:$0xff]
        %v292 = vld [vmem:[%s226 + $0x1f0] sm:$0xff]
        %v293 = vld [vmem:[%s226 + $0x1f8] sm:$0xff]
        %v294 = vld [vmem:[%s1] sm:$0xf]
        %v295 = vld [vmem:[%s1 + $0x4] sm:$0xf]
        %v296 = vld [vmem:[%s1 + $0x8] sm:$0xf]
        %v297 = vld [vmem:[%s1 + $0xc] sm:$0xf]
        %v298 = vld [vmem:[%s1 + $0x10] sm:$0xf]
        %v299 = vld [vmem:[%s1 + $0x14] sm:$0xf]
        %v300 = vld [vmem:[%s1 + $0x18] sm:$0xf]
        %v301 = vld [vmem:[%s1 + $0x1c] sm:$0xf]
        %v302 = vld [vmem:[%s1 + $0x20] sm:$0xf]
        %v303 = vld [vmem:[%s1 + $0x24] sm:$0xf]
        %v304 = vld [vmem:[%s1 + $0x28] sm:$0xf]
        %v305 = vld [vmem:[%s1 + $0x2c] sm:$0xf]
        %v306 = vld [vmem:[%s1 + $0x30] sm:$0xf]
        %v307 = vld [vmem:[%s1 + $0x34] sm:$0xf]
        %v308 = vld [vmem:[%s1 + $0x38] sm:$0xf]
        %v309 = vld [vmem:[%s1 + $0x3c] sm:$0xf]
        %v310 = vld [vmem:[%s1 + $0x40] sm:$0xf]
        %v311 = vld [vmem:[%s1 + $0x44] sm:$0xf]
        %v312 = vld [vmem:[%s1 + $0x48] sm:$0x3]
        %v313 = vld [vmem:[%s2] sm:$0x1]
        %v315 = vlaneseq
        %v316 = vshrl.u32 %v315, 7
        %v317 = vsub.s32 0, %v316
        %v318 = vrot.slane %v313, %v317
        %v384 = vunpack.c.l.b16 %v230
        %v385 = vunpack.c.h.b16 %v230
        %v386 = vunpack.c.l.b16 %v231
        %v387 = vunpack.c.h.b16 %v231
        %v388 = vunpack.c.l.b16 %v232
        %v389 = vunpack.c.h.b16 %v232
        %v390 = vunpack.c.l.b16 %v233
        %v391 = vunpack.c.h.b16 %v233
        %v392 = vunpack.c.l.b16 %v234
        %v393 = vunpack.c.h.b16 %v234
        %v394 = vunpack.c.l.b16 %v235
        %v395 = vunpack.c.h.b16 %v235
        %v396 = vunpack.c.l.b16 %v236
        %v397 = vunpack.c.h.b16 %v236
        %v398 = vunpack.c.l.b16 %v237
        %v399 = vunpack.c.h.b16 %v237
        %v400 = vunpack.c.l.b16 %v238
        %v401 = vunpack.c.h.b16 %v238
        %v402 = vunpack.c.l.b16 %v239
        %v403 = vunpack.c.h.b16 %v239
        %v404 = vunpack.c.l.b16 %v240
        %v405 = vunpack.c.h.b16 %v240
        %v406 = vunpack.c.l.b16 %v241
        %v407 = vunpack.c.h.b16 %v241
        %v408 = vunpack.c.l.b16 %v242
        %v409 = vunpack.c.h.b16 %v242
        %v410 = vunpack.c.l.b16 %v243
        %v411 = vunpack.c.h.b16 %v243
        %v412 = vunpack.c.l.b16 %v244
        %v413 = vunpack.c.h.b16 %v244
        %v414 = vunpack.c.l.b16 %v245
        %v415 = vunpack.c.h.b16 %v245
        %v416 = vunpack.c.l.b16 %v246
        %v417 = vunpack.c.h.b16 %v246
        %v418 = vunpack.c.l.b16 %v247
        %v419 = vunpack.c.h.b16 %v247
        %v420 = vunpack.c.l.b16 %v248
        %v421 = vunpack.c.h.b16 %v248
        %v422 = vunpack.c.l.b16 %v249
        %v423 = vunpack.c.h.b16 %v249
        %v424 = vunpack.c.l.b16 %v250
        %v425 = vunpack.c.h.b16 %v250
        %v426 = vunpack.c.l.b16 %v251
        %v427 = vunpack.c.h.b16 %v251
        %v428 = vunpack.c.l.b16 %v252
        %v429 = vunpack.c.h.b16 %v252
        %v430 = vunpack.c.l.b16 %v253
        %v431 = vunpack.c.h.b16 %v253
        %v432 = vunpack.c.l.b16 %v254
        %v433 = vunpack.c.h.b16 %v254
        %v434 = vunpack.c.l.b16 %v255
        %v435 = vunpack.c.h.b16 %v255
        %v436 = vunpack.c.l.b16 %v256
        %v437 = vunpack.c.h.b16 %v256
        %v438 = vunpack.c.l.b16 %v257
        %v439 = vunpack.c.h.b16 %v257
        %v440 = vunpack.c.l.b16 %v258
        %v441 = vunpack.c.h.b16 %v258
        %v442 = vunpack.c.l.b16 %v259
        %v443 = vunpack.c.h.b16 %v259
        %v444 = vunpack.c.l.b16 %v260
        %v445 = vunpack.c.h.b16 %v260
        %v446 = vunpack.c.l.b16 %v261
        %v447 = vunpack.c.h.b16 %v261
        %v448 = vunpack.c.l.b16 %v262
        %v449 = vunpack.c.h.b16 %v262
        %v450 = vunpack.c.l.b16 %v263
        %v451 = vunpack.c.h.b16 %v263
        %v452 = vunpack.c.l.b16 %v264
        %v453 = vunpack.c.h.b16 %v264
        %v454 = vunpack.c.l.b16 %v265
        %v455 = vunpack.c.h.b16 %v265
        %v456 = vunpack.c.l.b16 %v266
        %v457 = vunpack.c.h.b16 %v266
        %v458 = vunpack.c.l.b16 %v267
        %v459 = vunpack.c.h.b16 %v267
        %v460 = vunpack.c.l.b16 %v268
        %v461 = vunpack.c.h.b16 %v268
        %v462 = vunpack.c.l.b16 %v269
        %v463 = vunpack.c.h.b16 %v269
        %v464 = vunpack.c.l.b16 %v270
        %v465 = vunpack.c.h.b16 %v270
        %v466 = vunpack.c.l.b16 %v271
        %v467 = vunpack.c.h.b16 %v271
        %v468 = vunpack.c.l.b16 %v272
        %v469 = vunpack.c.h.b16 %v272
        %v470 = vunpack.c.l.b16 %v273
        %v471 = vunpack.c.h.b16 %v273
        %v472 = vunpack.c.l.b16 %v274
        %v473 = vunpack.c.h.b16 %v274
        %v474 = vunpack.c.l.b16 %v275
        %v475 = vunpack.c.h.b16 %v275
        %v476 = vunpack.c.l.b16 %v276
        %v477 = vunpack.c.h.b16 %v276
        %v478 = vunpack.c.l.b16 %v277
        %v479 = vunpack.c.h.b16 %v277
        %v480 = vunpack.c.l.b16 %v278
        %v481 = vunpack.c.h.b16 %v278
        %v482 = vunpack.c.l.b16 %v279
        %v483 = vunpack.c.h.b16 %v279
        %v484 = vunpack.c.l.b16 %v280
        %v485 = vunpack.c.h.b16 %v280
        %v486 = vunpack.c.l.b16 %v281
        %v487 = vunpack.c.h.b16 %v281
        %v488 = vunpack.c.l.b16 %v282
        %v489 = vunpack.c.h.b16 %v282
        %v490 = vunpack.c.l.b16 %v283
        %v491 = vunpack.c.h.b16 %v283
        %v492 = vunpack.c.l.b16 %v284
        %v493 = vunpack.c.h.b16 %v284
        %v494 = vunpack.c.l.b16 %v285
        %v495 = vunpack.c.h.b16 %v285
        %v496 = vunpack.c.l.b16 %v286
        %v497 = vunpack.c.h.b16 %v286
        %v498 = vunpack.c.l.b16 %v287
        %v499 = vunpack.c.h.b16 %v287
        %v500 = vunpack.c.l.b16 %v288
        %v501 = vunpack.c.h.b16 %v288
        %v502 = vunpack.c.l.b16 %v289
        %v503 = vunpack.c.h.b16 %v289
        %v504 = vunpack.c.l.b16 %v290
        %v505 = vunpack.c.h.b16 %v290
        %v506 = vunpack.c.l.b16 %v291
        %v507 = vunpack.c.h.b16 %v291
        %v508 = vunpack.c.l.b16 %v292
        %v509 = vunpack.c.h.b16 %v292
        %v510 = vunpack.c.l.b16 %v293
        %v511 = vunpack.c.h.b16 %v293
        %v512 = vpack.c.b16 %v386, %v384
        %v513 = vpack.c.b16 %v387, %v385
        %v514 = vpack.c.b16 %v390, %v388
        %v515 = vpack.c.b16 %v391, %v389
        %v516 = vpack.c.b16 %v394, %v392
        %v517 = vpack.c.b16 %v395, %v393
        %v518 = vpack.c.b16 %v398, %v396
        %v519 = vpack.c.b16 %v399, %v397
        %v520 = vpack.c.b16 %v402, %v400
        %v521 = vpack.c.b16 %v403, %v401
        %v522 = vpack.c.b16 %v406, %v404
        %v523 = vpack.c.b16 %v407, %v405
        %v524 = vpack.c.b16 %v410, %v408
        %v525 = vpack.c.b16 %v411, %v409
        %v526 = vpack.c.b16 %v414, %v412
        %v527 = vpack.c.b16 %v415, %v413
        %v528 = vpack.c.b16 %v418, %v416
        %v529 = vpack.c.b16 %v419, %v417
        %v530 = vpack.c.b16 %v422, %v420
        %v531 = vpack.c.b16 %v423, %v421
        %v532 = vpack.c.b16 %v426, %v424
        %v533 = vpack.c.b16 %v427, %v425
        %v534 = vpack.c.b16 %v430, %v428
        %v535 = vpack.c.b16 %v431, %v429
        %v536 = vpack.c.b16 %v434, %v432
        %v537 = vpack.c.b16 %v435, %v433
        %v538 = vpack.c.b16 %v438, %v436
        %v539 = vpack.c.b16 %v439, %v437
        %v540 = vpack.c.b16 %v442, %v440
        %v541 = vpack.c.b16 %v443, %v441
        %v542 = vpack.c.b16 %v446, %v444
        %v543 = vpack.c.b16 %v447, %v445
        %v544 = vpack.c.b16 %v450, %v448
        %v545 = vpack.c.b16 %v451, %v449
        %v546 = vpack.c.b16 %v454, %v452
        %v547 = vpack.c.b16 %v455, %v453
        %v548 = vpack.c.b16 %v458, %v456
        %v549 = vpack.c.b16 %v459, %v457
        %v550 = vpack.c.b16 %v462, %v460
        %v551 = vpack.c.b16 %v463, %v461
        %v552 = vpack.c.b16 %v466, %v464
        %v553 = vpack.c.b16 %v467, %v465
        %v554 = vpack.c.b16 %v470, %v468
        %v555 = vpack.c.b16 %v471, %v469
        %v556 = vpack.c.b16 %v474, %v472
        %v557 = vpack.c.b16 %v475, %v473
        %v558 = vpack.c.b16 %v478, %v476
        %v559 = vpack.c.b16 %v479, %v477
        %v560 = vpack.c.b16 %v482, %v480
        %v561 = vpack.c.b16 %v483, %v481
        %v562 = vpack.c.b16 %v486, %v484
        %v563 = vpack.c.b16 %v487, %v485
        %v564 = vpack.c.b16 %v490, %v488
        %v565 = vpack.c.b16 %v491, %v489
        %v566 = vpack.c.b16 %v494, %v492
        %v567 = vpack.c.b16 %v495, %v493
        %v568 = vpack.c.b16 %v498, %v496
        %v569 = vpack.c.b16 %v499, %v497
        %v570 = vpack.c.b16 %v502, %v500
        %v571 = vpack.c.b16 %v503, %v501
        %v572 = vpack.c.b16 %v506, %v504
        %v573 = vpack.c.b16 %v507, %v505
        %v574 = vpack.c.b16 %v510, %v508
        %v575 = vpack.c.b16 %v511, %v509
        %v627 = vunpack.c.l.b16 %v294
        %v628 = vunpack.c.l.b16 %v295
        %v629 = vunpack.c.l.b16 %v296
        %v630 = vunpack.c.l.b16 %v297
        %v631 = vunpack.c.l.b16 %v298
        %v632 = vunpack.c.l.b16 %v299
        %v633 = vunpack.c.l.b16 %v300
        %v634 = vunpack.c.l.b16 %v301
        %v635 = vunpack.c.l.b16 %v302
        %v636 = vunpack.c.l.b16 %v303
        %v637 = vunpack.c.l.b16 %v304
        %v638 = vunpack.c.l.b16 %v305
        %v639 = vunpack.c.l.b16 %v306
        %v640 = vunpack.c.l.b16 %v307
        %v641 = vunpack.c.l.b16 %v308
        %v642 = vunpack.c.l.b16 %v309
        %v643 = vunpack.c.l.b16 %v310
        %v644 = vunpack.c.l.b16 %v311
        %v645 = vunpack.c.l.b16 %v312
        %v646 = vpack.c.b16 %v628, %v627
        %v647 = vpack.c.b16 %v630, %v629
        %v648 = vpack.c.b16 %v632, %v631
        %v649 = vpack.c.b16 %v634, %v633
        %v650 = vpack.c.b16 %v636, %v635
        %v651 = vpack.c.b16 %v638, %v637
        %v652 = vpack.c.b16 %v640, %v639
        %v653 = vpack.c.b16 %v642, %v641
        %v654 = vpack.c.b16 %v644, %v643
        %v655 = vpack.c.b16 %v645, %v645
        %vm665 = vcmask 154624
        %v667 = vsel %vm665, %v513, 0
        %v670 = vsel %vm665, %v515, 0
        %v673 = vsel %vm665, %v517, 0
        %v676 = vsel %vm665, %v519, 0
        %v679 = vsel %vm665, %v521, 0
        %v682 = vsel %vm665, %v523, 0
        %v685 = vsel %vm665, %v525, 0
        %v688 = vsel %vm665, %v527, 0
        %v691 = vsel %vm665, %v529, 0
        %v694 = vsel %vm665, %v531, 0
        %v697 = vsel %vm665, %v533, 0
        %v700 = vsel %vm665, %v535, 0
        %v703 = vsel %vm665, %v537, 0
        %v706 = vsel %vm665, %v539, 0
        %v709 = vsel %vm665, %v541, 0
        %v712 = vsel %vm665, %v543, 0
        %v715 = vsel %vm665, %v545, 0
        %v718 = vsel %vm665, %v547, 0
        %v721 = vsel %vm665, %v549, 0
        %v724 = vsel %vm665, %v551, 0
        %v727 = vsel %vm665, %v553, 0
        %v730 = vsel %vm665, %v555, 0
        %v733 = vsel %vm665, %v557, 0
        %v736 = vsel %vm665, %v559, 0
        %v739 = vsel %vm665, %v561, 0
        %v742 = vsel %vm665, %v563, 0
        %v745 = vsel %vm665, %v565, 0
        %v748 = vsel %vm665, %v567, 0
        %v751 = vsel %vm665, %v569, 0
        %v754 = vsel %vm665, %v571, 0
        %v757 = vsel %vm665, %v573, 0
        %v760 = vsel %vm665, %v575, 0
        %vm762 = vcmask 1040384
        %vm763 = vcmask 1041408
        %v764 = vsel %vm762, 4294967295, 65535
        %v765 = vsel %vm763, %v764, 0
        %v767 = vand.u32 %v655, %v765
        %769 = vmatprep.subr.bf16.mxu0 0
        %770 = vmatpush1.bf16.msra.mxu0 %v646
        %771 = vmatprep.subr.bf16.mxu0 0
        %772 = vmatpush1.bf16.msra.mxu0 %v647
        %773 = vmatprep.subr.bf16.mxu0 0
        %774 = vmatpush1.bf16.msra.mxu0 %v648
        %775 = vmatprep.subr.bf16.mxu0 0
        %776 = vmatpush1.bf16.msra.mxu0 %v649
        %777 = vmatprep.subr.bf16.mxu0 0
        %778 = vmatpush1.bf16.msra.mxu0 %v650
        %779 = vmatprep.subr.bf16.mxu0 0
        %780 = vmatpush1.bf16.msra.mxu0 %v651
        %781 = vmatprep.subr.bf16.mxu0 0
        %782 = vmatpush1.bf16.msra.mxu0 %v652
        %783 = vmatprep.subr.bf16.mxu0 0
        %784 = vmatpush1.bf16.msra.mxu0 %v653
        %785 = vmatprep.subr.bf16.mxu0 0
        %786 = vmatpush1.bf16.msra.mxu0 %v654
        %787 = vmatprep.subr.bf16.mxu0 0
        %788 = vmatpush1.bf16.msra.mxu0 %v767
        %789 = vmatprep.subr.bf16.mxu0 0
        %790 = vmatpush1.bf16.msra.mxu0 0
        %791 = vmatprep.subr.bf16.mxu0 0
        %792 = vmatpush1.bf16.msra.mxu0 0
        %793 = vmatprep.subr.bf16.mxu0 0
        %794 = vmatpush1.bf16.msra.mxu0 0
        %795 = vmatprep.subr.bf16.mxu0 0
        %796 = vmatpush1.bf16.msra.mxu0 0
        %797 = vmatprep.subr.bf16.mxu0 0
        %798 = vmatpush1.bf16.msra.mxu0 0
        %799 = vmatprep.subr.bf16.mxu0 0
        %800 = vmatpush1.bf16.msra.mxu0 0
        %801 = vmatprep.mubr.bf16.mxu0 %v667
        %802 = vmatmul.mubr.bf16.gmra.mrb[0].mxu0 %v512
        %v803 = vpop.f32.mrb[0].mxu0
        %v804 = vadd.f32 %v318, %v803
        %v805 = vpop.f32.mrb[0].mxu0
        %v806 = vpop.f32.mrb[0].mxu0
        %v807 = vadd.f32 %v318, %v806
        %v808 = vpop.f32.mrb[0].mxu0
        %809 = vmatprep.mubr.bf16.mxu0 %v670
        %810 = vmatmul.mubr.bf16.gmra.mrb[0].mxu0 %v514
        %v811 = vpop.f32.mrb[0].mxu0
        %v812 = vadd.f32 %v318, %v811
        %v813 = vpop.f32.mrb[0].mxu0
        %v814 = vpop.f32.mrb[0].mxu0
        %v815 = vadd.f32 %v318, %v814
        %v816 = vpop.f32.mrb[0].mxu0
        %817 = vmatprep.mubr.bf16.mxu0 %v673
        %818 = vmatmul.mubr.bf16.gmra.mrb[0].mxu0 %v516
        %v819 = vpop.f32.mrb[0].mxu0
        %v820 = vadd.f32 %v318, %v819
        %v821 = vpop.f32.mrb[0].mxu0
        %v822 = vpop.f32.mrb[0].mxu0
        %v823 = vadd.f32 %v318, %v822
        %v824 = vpop.f32.mrb[0].mxu0
        %825 = vmatprep.mubr.bf16.mxu0 %v676
        %826 = vmatmul.mubr.bf16.gmra.mrb[0].mxu0 %v518
        %v827 = vpop.f32.mrb[0].mxu0
        %v828 = vadd.f32 %v318, %v827
        %v829 = vpop.f32.mrb[0].mxu0
        %v830 = vpop.f32.mrb[0].mxu0
        %v831 = vadd.f32 %v318, %v830
        %v832 = vpop.f32.mrb[0].mxu0
        %833 = vmatprep.mubr.bf16.mxu0 %v679
        %834 = vmatmul.mubr.bf16.gmra.mrb[0].mxu0 %v520
        %v835 = vpop.f32.mrb[0].mxu0
        %v836 = vadd.f32 %v318, %v835
        %v837 = vpop.f32.mrb[0].mxu0
        %v838 = vpop.f32.mrb[0].mxu0
        %v839 = vadd.f32 %v318, %v838
        %v840 = vpop.f32.mrb[0].mxu0
        %841 = vmatprep.mubr.bf16.mxu0 %v682
        %842 = vmatmul.mubr.bf16.gmra.mrb[0].mxu0 %v522
        %v843 = vpop.f32.mrb[0].mxu0
        %v844 = vadd.f32 %v318, %v843
        %v845 = vpop.f32.mrb[0].mxu0
        %v846 = vpop.f32.mrb[0].mxu0
        %v847 = vadd.f32 %v318, %v846
        %v848 = vpop.f32.mrb[0].mxu0
        %849 = vmatprep.mubr.bf16.mxu0 %v685
        %850 = vmatmul.mubr.bf16.gmra.mrb[0].mxu0 %v524
        %v851 = vpop.f32.mrb[0].mxu0
        %v852 = vadd.f32 %v318, %v851
        %v853 = vpop.f32.mrb[0].mxu0
        %v854 = vpop.f32.mrb[0].mxu0
        %v855 = vadd.f32 %v318, %v854
        %v856 = vpop.f32.mrb[0].mxu0
        %857 = vmatprep.mubr.bf16.mxu0 %v688
        %858 = vmatmul.mubr.bf16.gmra.mrb[0].mxu0 %v526
        %v859 = vpop.f32.mrb[0].mxu0
        %v860 = vadd.f32 %v318, %v859
        %v861 = vpop.f32.mrb[0].mxu0
        %v862 = vpop.f32.mrb[0].mxu0
        %v863 = vadd.f32 %v318, %v862
        %v864 = vpop.f32.mrb[0].mxu0
        %865 = vmatprep.mubr.bf16.mxu0 %v691
        %866 = vmatmul.mubr.bf16.gmra.mrb[0].mxu0 %v528
        %v867 = vpop.f32.mrb[0].mxu0
        %v868 = vadd.f32 %v318, %v867
        %v869 = vpop.f32.mrb[0].mxu0
        %v870 = vpop.f32.mrb[0].mxu0
        %v871 = vadd.f32 %v318, %v870
        %v872 = vpop.f32.mrb[0].mxu0
        %873 = vmatprep.mubr.bf16.mxu0 %v694
        %874 = vmatmul.mubr.bf16.gmra.mrb[0].mxu0 %v530
        %v875 = vpop.f32.mrb[0].mxu0
        %v876 = vadd.f32 %v318, %v875
        %v877 = vpop.f32.mrb[0].mxu0
        %v878 = vpop.f32.mrb[0].mxu0
        %v879 = vadd.f32 %v318, %v878
        %v880 = vpop.f32.mrb[0].mxu0
        %881 = vmatprep.mubr.bf16.mxu0 %v697
        %882 = vmatmul.mubr.bf16.gmra.mrb[0].mxu0 %v532
        %v883 = vpop.f32.mrb[0].mxu0
        %v884 = vadd.f32 %v318, %v883
        %v885 = vpop.f32.mrb[0].mxu0
        %v886 = vpop.f32.mrb[0].mxu0
        %v887 = vadd.f32 %v318, %v886
        %v888 = vpop.f32.mrb[0].mxu0
        %889 = vmatprep.mubr.bf16.mxu0 %v700
        %890 = vmatmul.mubr.bf16.gmra.mrb[0].mxu0 %v534
        %v891 = vpop.f32.mrb[0].mxu0
        %v892 = vadd.f32 %v318, %v891
        %v893 = vpop.f32.mrb[0].mxu0
        %v894 = vpop.f32.mrb[0].mxu0
        %v895 = vadd.f32 %v318, %v894
        %v896 = vpop.f32.mrb[0].mxu0
        %897 = vmatprep.mubr.bf16.mxu0 %v703
        %898 = vmatmul.mubr.bf16.gmra.mrb[0].mxu0 %v536
        %v899 = vpop.f32.mrb[0].mxu0
        %v900 = vadd.f32 %v318, %v899
        %v901 = vpop.f32.mrb[0].mxu0
        %v902 = vpop.f32.mrb[0].mxu0
        %v903 = vadd.f32 %v318, %v902
        %v904 = vpop.f32.mrb[0].mxu0
        %905 = vmatprep.mubr.bf16.mxu0 %v706
        %906 = vmatmul.mubr.bf16.gmra.mrb[0].mxu0 %v538
        %v907 = vpop.f32.mrb[0].mxu0
        %v908 = vadd.f32 %v318, %v907
        %v909 = vpop.f32.mrb[0].mxu0
        %v910 = vpop.f32.mrb[0].mxu0
        %v911 = vadd.f32 %v318, %v910
        %v912 = vpop.f32.mrb[0].mxu0
        %913 = vmatprep.mubr.bf16.mxu0 %v709
        %914 = vmatmul.mubr.bf16.gmra.mrb[0].mxu0 %v540
        %v915 = vpop.f32.mrb[0].mxu0
        %v916 = vadd.f32 %v318, %v915
        %v917 = vpop.f32.mrb[0].mxu0
        %v918 = vpop.f32.mrb[0].mxu0
        %v919 = vadd.f32 %v318, %v918
        %v920 = vpop.f32.mrb[0].mxu0
        %921 = vmatprep.mubr.bf16.mxu0 %v712
        %922 = vmatmul.mubr.bf16.gmra.mrb[0].mxu0 %v542
        %v923 = vpop.f32.mrb[0].mxu0
        %v924 = vadd.f32 %v318, %v923
        %v925 = vpop.f32.mrb[0].mxu0
        %v926 = vpop.f32.mrb[0].mxu0
        %v927 = vadd.f32 %v318, %v926
        %v928 = vpop.f32.mrb[0].mxu0
        %929 = vmatprep.mubr.bf16.mxu0 %v715
        %930 = vmatmul.mubr.bf16.gmra.mrb[0].mxu0 %v544
        %v931 = vpop.f32.mrb[0].mxu0
        %v932 = vadd.f32 %v318, %v931
        %v933 = vpop.f32.mrb[0].mxu0
        %v934 = vpop.f32.mrb[0].mxu0
        %v935 = vadd.f32 %v318, %v934
        %v936 = vpop.f32.mrb[0].mxu0
        %937 = vmatprep.mubr.bf16.mxu0 %v718
        %938 = vmatmul.mubr.bf16.gmra.mrb[0].mxu0 %v546
        %v939 = vpop.f32.mrb[0].mxu0
        %v940 = vadd.f32 %v318, %v939
        %v941 = vpop.f32.mrb[0].mxu0
        %v942 = vpop.f32.mrb[0].mxu0
        %v943 = vadd.f32 %v318, %v942
        %v944 = vpop.f32.mrb[0].mxu0
        %945 = vmatprep.mubr.bf16.mxu0 %v721
        %946 = vmatmul.mubr.bf16.gmra.mrb[0].mxu0 %v548
        %v947 = vpop.f32.mrb[0].mxu0
        %v948 = vadd.f32 %v318, %v947
        %v949 = vpop.f32.mrb[0].mxu0
        %v950 = vpop.f32.mrb[0].mxu0
        %v951 = vadd.f32 %v318, %v950
        %v952 = vpop.f32.mrb[0].mxu0
        %953 = vmatprep.mubr.bf16.mxu0 %v724
        %954 = vmatmul.mubr.bf16.gmra.mrb[0].mxu0 %v550
        %v955 = vpop.f32.mrb[0].mxu0
        %v956 = vadd.f32 %v318, %v955
        %v957 = vpop.f32.mrb[0].mxu0
        %v958 = vpop.f32.mrb[0].mxu0
        %v959 = vadd.f32 %v318, %v958
        %v960 = vpop.f32.mrb[0].mxu0
        %961 = vmatprep.mubr.bf16.mxu0 %v727
        %962 = vmatmul.mubr.bf16.gmra.mrb[0].mxu0 %v552
        %v963 = vpop.f32.mrb[0].mxu0
        %v964 = vadd.f32 %v318, %v963
        %v965 = vpop.f32.mrb[0].mxu0
        %v966 = vpop.f32.mrb[0].mxu0
        %v967 = vadd.f32 %v318, %v966
        %v968 = vpop.f32.mrb[0].mxu0
        %969 = vmatprep.mubr.bf16.mxu0 %v730
        %970 = vmatmul.mubr.bf16.gmra.mrb[0].mxu0 %v554
        %v971 = vpop.f32.mrb[0].mxu0
        %v972 = vadd.f32 %v318, %v971
        %v973 = vpop.f32.mrb[0].mxu0
        %v974 = vpop.f32.mrb[0].mxu0
        %v975 = vadd.f32 %v318, %v974
        %v976 = vpop.f32.mrb[0].mxu0
        %977 = vmatprep.mubr.bf16.mxu0 %v733
        %978 = vmatmul.mubr.bf16.gmra.mrb[0].mxu0 %v556
        %v979 = vpop.f32.mrb[0].mxu0
        %v980 = vadd.f32 %v318, %v979
        %v981 = vpop.f32.mrb[0].mxu0
        %v982 = vpop.f32.mrb[0].mxu0
        %v983 = vadd.f32 %v318, %v982
        %v984 = vpop.f32.mrb[0].mxu0
        %985 = vmatprep.mubr.bf16.mxu0 %v736
        %986 = vmatmul.mubr.bf16.gmra.mrb[0].mxu0 %v558
        %v987 = vpop.f32.mrb[0].mxu0
        %v988 = vadd.f32 %v318, %v987
        %v989 = vpop.f32.mrb[0].mxu0
        %v990 = vpop.f32.mrb[0].mxu0
        %v991 = vadd.f32 %v318, %v990
        %v992 = vpop.f32.mrb[0].mxu0
        %993 = vmatprep.mubr.bf16.mxu0 %v739
        %994 = vmatmul.mubr.bf16.gmra.mrb[0].mxu0 %v560
        %v995 = vpop.f32.mrb[0].mxu0
        %v996 = vadd.f32 %v318, %v995
        %v997 = vpop.f32.mrb[0].mxu0
        %v998 = vpop.f32.mrb[0].mxu0
        %v999 = vadd.f32 %v318, %v998
        %v1000 = vpop.f32.mrb[0].mxu0
        %1001 = vmatprep.mubr.bf16.mxu0 %v742
        %1002 = vmatmul.mubr.bf16.gmra.mrb[0].mxu0 %v562
        %v1003 = vpop.f32.mrb[0].mxu0
        %v1004 = vadd.f32 %v318, %v1003
        %v1005 = vpop.f32.mrb[0].mxu0
        %v1006 = vpop.f32.mrb[0].mxu0
        %v1007 = vadd.f32 %v318, %v1006
        %v1008 = vpop.f32.mrb[0].mxu0
        %1009 = vmatprep.mubr.bf16.mxu0 %v745
        %1010 = vmatmul.mubr.bf16.gmra.mrb[0].mxu0 %v564
        %v1011 = vpop.f32.mrb[0].mxu0
        %v1012 = vadd.f32 %v318, %v1011
        %v1013 = vpop.f32.mrb[0].mxu0
        %v1014 = vpop.f32.mrb[0].mxu0
        %v1015 = vadd.f32 %v318, %v1014
        %v1016 = vpop.f32.mrb[0].mxu0
        %1017 = vmatprep.mubr.bf16.mxu0 %v748
        %1018 = vmatmul.mubr.bf16.gmra.mrb[0].mxu0 %v566
        %v1019 = vpop.f32.mrb[0].mxu0
        %v1020 = vadd.f32 %v318, %v1019
        %v1021 = vpop.f32.mrb[0].mxu0
        %v1022 = vpop.f32.mrb[0].mxu0
        %v1023 = vadd.f32 %v318, %v1022
        %v1024 = vpop.f32.mrb[0].mxu0
        %1025 = vmatprep.mubr.bf16.mxu0 %v751
        %1026 = vmatmul.mubr.bf16.gmra.mrb[0].mxu0 %v568
        %v1027 = vpop.f32.mrb[0].mxu0
        %v1028 = vadd.f32 %v318, %v1027
        %v1029 = vpop.f32.mrb[0].mxu0
        %v1030 = vpop.f32.mrb[0].mxu0
        %v1031 = vadd.f32 %v318, %v1030
        %v1032 = vpop.f32.mrb[0].mxu0
        %1033 = vmatprep.mubr.bf16.mxu0 %v754
        %1034 = vmatmul.mubr.bf16.gmra.mrb[0].mxu0 %v570
        %v1035 = vpop.f32.mrb[0].mxu0
        %v1036 = vadd.f32 %v318, %v1035
        %v1037 = vpop.f32.mrb[0].mxu0
        %v1038 = vpop.f32.mrb[0].mxu0
        %v1039 = vadd.f32 %v318, %v1038
        %v1040 = vpop.f32.mrb[0].mxu0
        %1041 = vmatprep.mubr.bf16.mxu0 %v757
        %1042 = vmatmul.mubr.bf16.gmra.mrb[0].mxu0 %v572
        %v1043 = vpop.f32.mrb[0].mxu0
        %v1044 = vadd.f32 %v318, %v1043
        %v1045 = vpop.f32.mrb[0].mxu0
        %v1046 = vpop.f32.mrb[0].mxu0
        %v1047 = vadd.f32 %v318, %v1046
        %v1048 = vpop.f32.mrb[0].mxu0
        %1049 = vmatprep.mubr.bf16.mxu0 %v760
        %1050 = vmatmul.mubr.bf16.gmra.mrb[0].mxu0 %v574
        %v1051 = vpop.f32.mrb[0].mxu0
        %v1052 = vadd.f32 %v318, %v1051
        %v1053 = vpop.f32.mrb[0].mxu0
        %v1054 = vpop.f32.mrb[0].mxu0
        %v1055 = vadd.f32 %v318, %v1054
        %v1056 = vpop.f32.mrb[0].mxu0
        %1057 = vdwg.mxu0
        %1058 = vadd.xlane.f32.xlu0 %v804
        %v1059 = vpop.xlane.xlu0 %1058
        %1060 = vadd.xlane.f32.xlu0 %v807
        %v1061 = vpop.xlane.xlu0 %1060
        %1062 = vadd.xlane.f32.xlu0 %v812
        %v1063 = vpop.xlane.xlu0 %1062
        %1064 = vadd.xlane.f32.xlu0 %v815
        %v1065 = vpop.xlane.xlu0 %1064
        %1066 = vadd.xlane.f32.xlu0 %v820
        %v1067 = vpop.xlane.xlu0 %1066
        %1068 = vadd.xlane.f32.xlu0 %v823
        %v1069 = vpop.xlane.xlu0 %1068
        %1070 = vadd.xlane.f32.xlu0 %v828
        %v1071 = vpop.xlane.xlu0 %1070
        %1072 = vadd.xlane.f32.xlu0 %v831
        %v1073 = vpop.xlane.xlu0 %1072
        %1074 = vadd.xlane.f32.xlu0 %v836
        %v1075 = vpop.xlane.xlu0 %1074
        %1076 = vadd.xlane.f32.xlu0 %v839
        %v1077 = vpop.xlane.xlu0 %1076
        %1078 = vadd.xlane.f32.xlu0 %v844
        %v1079 = vpop.xlane.xlu0 %1078
        %1080 = vadd.xlane.f32.xlu0 %v847
        %v1081 = vpop.xlane.xlu0 %1080
        %1082 = vadd.xlane.f32.xlu0 %v852
        %v1083 = vpop.xlane.xlu0 %1082
        %1084 = vadd.xlane.f32.xlu0 %v855
        %v1085 = vpop.xlane.xlu0 %1084
        %1086 = vadd.xlane.f32.xlu0 %v860
        %v1087 = vpop.xlane.xlu0 %1086
        %1088 = vadd.xlane.f32.xlu0 %v863
        %v1089 = vpop.xlane.xlu0 %1088
        %1090 = vadd.xlane.f32.xlu0 %v868
        %v1091 = vpop.xlane.xlu0 %1090
        %1092 = vadd.xlane.f32.xlu0 %v871
        %v1093 = vpop.xlane.xlu0 %1092
        %1094 = vadd.xlane.f32.xlu0 %v876
        %v1095 = vpop.xlane.xlu0 %1094
        %1096 = vadd.xlane.f32.xlu0 %v879
        %v1097 = vpop.xlane.xlu0 %1096
        %1098 = vadd.xlane.f32.xlu0 %v884
        %v1099 = vpop.xlane.xlu0 %1098
        %1100 = vadd.xlane.f32.xlu0 %v887
        %v1101 = vpop.xlane.xlu0 %1100
        %1102 = vadd.xlane.f32.xlu0 %v892
        %v1103 = vpop.xlane.xlu0 %1102
        %1104 = vadd.xlane.f32.xlu0 %v895
        %v1105 = vpop.xlane.xlu0 %1104
        %1106 = vadd.xlane.f32.xlu0 %v900
        %v1107 = vpop.xlane.xlu0 %1106
        %1108 = vadd.xlane.f32.xlu0 %v903
        %v1109 = vpop.xlane.xlu0 %1108
        %1110 = vadd.xlane.f32.xlu0 %v908
        %v1111 = vpop.xlane.xlu0 %1110
        %1112 = vadd.xlane.f32.xlu0 %v911
        %v1113 = vpop.xlane.xlu0 %1112
        %1114 = vadd.xlane.f32.xlu0 %v916
        %v1115 = vpop.xlane.xlu0 %1114
        %1116 = vadd.xlane.f32.xlu0 %v919
        %v1117 = vpop.xlane.xlu0 %1116
        %1118 = vadd.xlane.f32.xlu0 %v924
        %v1119 = vpop.xlane.xlu0 %1118
        %1120 = vadd.xlane.f32.xlu0 %v927
        %v1121 = vpop.xlane.xlu0 %1120
        %1122 = vadd.xlane.f32.xlu0 %v932
        %v1123 = vpop.xlane.xlu0 %1122
        %1124 = vadd.xlane.f32.xlu0 %v935
        %v1125 = vpop.xlane.xlu0 %1124
        %1126 = vadd.xlane.f32.xlu0 %v940
        %v1127 = vpop.xlane.xlu0 %1126
        %1128 = vadd.xlane.f32.xlu0 %v943
        %v1129 = vpop.xlane.xlu0 %1128
        %1130 = vadd.xlane.f32.xlu0 %v948
        %v1131 = vpop.xlane.xlu0 %1130
        %1132 = vadd.xlane.f32.xlu0 %v951
        %v1133 = vpop.xlane.xlu0 %1132
        %1134 = vadd.xlane.f32.xlu0 %v956
        %v1135 = vpop.xlane.xlu0 %1134
        %1136 = vadd.xlane.f32.xlu0 %v959
        %v1137 = vpop.xlane.xlu0 %1136
        %1138 = vadd.xlane.f32.xlu0 %v964
        %v1139 = vpop.xlane.xlu0 %1138
        %1140 = vadd.xlane.f32.xlu0 %v967
        %v1141 = vpop.xlane.xlu0 %1140
        %1142 = vadd.xlane.f32.xlu0 %v972
        %v1143 = vpop.xlane.xlu0 %1142
        %1144 = vadd.xlane.f32.xlu0 %v975
        %v1145 = vpop.xlane.xlu0 %1144
        %1146 = vadd.xlane.f32.xlu0 %v980
        %v1147 = vpop.xlane.xlu0 %1146
        %1148 = vadd.xlane.f32.xlu0 %v983
        %v1149 = vpop.xlane.xlu0 %1148
        %1150 = vadd.xlane.f32.xlu0 %v988
        %v1151 = vpop.xlane.xlu0 %1150
        %1152 = vadd.xlane.f32.xlu0 %v991
        %v1153 = vpop.xlane.xlu0 %1152
        %1154 = vadd.xlane.f32.xlu0 %v996
        %v1155 = vpop.xlane.xlu0 %1154
        %1156 = vadd.xlane.f32.xlu0 %v999
        %v1157 = vpop.xlane.xlu0 %1156
        %1158 = vadd.xlane.f32.xlu0 %v1004
        %v1159 = vpop.xlane.xlu0 %1158
        %1160 = vadd.xlane.f32.xlu0 %v1007
        %v1161 = vpop.xlane.xlu0 %1160
        %1162 = vadd.xlane.f32.xlu0 %v1012
        %v1163 = vpop.xlane.xlu0 %1162
        %1164 = vadd.xlane.f32.xlu0 %v1015
        %v1165 = vpop.xlane.xlu0 %1164
        %1166 = vadd.xlane.f32.xlu0 %v1020
        %v1167 = vpop.xlane.xlu0 %1166
        %1168 = vadd.xlane.f32.xlu0 %v1023
        %v1169 = vpop.xlane.xlu0 %1168
        %1170 = vadd.xlane.f32.xlu0 %v1028
        %v1171 = vpop.xlane.xlu0 %1170
        %1172 = vadd.xlane.f32.xlu0 %v1031
        %v1173 = vpop.xlane.xlu0 %1172
        %1174 = vadd.xlane.f32.xlu0 %v1036
        %v1175 = vpop.xlane.xlu0 %1174
        %1176 = vadd.xlane.f32.xlu0 %v1039
        %v1177 = vpop.xlane.xlu0 %1176
        %1178 = vadd.xlane.f32.xlu0 %v1044
        %v1179 = vpop.xlane.xlu0 %1178
        %1180 = vadd.xlane.f32.xlu0 %v1047
        %v1181 = vpop.xlane.xlu0 %1180
        %1182 = vadd.xlane.f32.xlu0 %v1052
        %v1183 = vpop.xlane.xlu0 %1182
        %1184 = vadd.xlane.f32.xlu0 %v1055
        %v1185 = vpop.xlane.xlu0 %1184
        %v1186 = vmul.f32 %v804, %v804
        %v1187 = vmul.f32 %v807, %v807
        %v1188 = vmul.f32 %v812, %v812
        %v1189 = vmul.f32 %v815, %v815
        %v1190 = vmul.f32 %v820, %v820
        %v1191 = vmul.f32 %v823, %v823
        %v1192 = vmul.f32 %v828, %v828
        %v1193 = vmul.f32 %v831, %v831
        %v1194 = vmul.f32 %v836, %v836
        %v1195 = vmul.f32 %v839, %v839
        %v1196 = vmul.f32 %v844, %v844
        %v1197 = vmul.f32 %v847, %v847
        %v1198 = vmul.f32 %v852, %v852
        %v1199 = vmul.f32 %v855, %v855
        %v1200 = vmul.f32 %v860, %v860
        %v1201 = vmul.f32 %v863, %v863
        %v1202 = vmul.f32 %v868, %v868
        %v1203 = vmul.f32 %v871, %v871
        %v1204 = vmul.f32 %v876, %v876
        %v1205 = vmul.f32 %v879, %v879
        %v1206 = vmul.f32 %v884, %v884
        %v1207 = vmul.f32 %v887, %v887
        %v1208 = vmul.f32 %v892, %v892
        %v1209 = vmul.f32 %v895, %v895
        %v1210 = vmul.f32 %v900, %v900
        %v1211 = vmul.f32 %v903, %v903
        %v1212 = vmul.f32 %v908, %v908
        %v1213 = vmul.f32 %v911, %v911
        %v1214 = vmul.f32 %v916, %v916
        %v1215 = vmul.f32 %v919, %v919
        %v1216 = vmul.f32 %v924, %v924
        %v1217 = vmul.f32 %v927, %v927
        %v1218 = vmul.f32 %v932, %v932
        %v1219 = vmul.f32 %v935, %v935
        %v1220 = vmul.f32 %v940, %v940
        %v1221 = vmul.f32 %v943, %v943
        %v1222 = vmul.f32 %v948, %v948
        %v1223 = vmul.f32 %v951, %v951
        %v1224 = vmul.f32 %v956, %v956
        %v1225 = vmul.f32 %v959, %v959
        %v1226 = vmul.f32 %v964, %v964
        %v1227 = vmul.f32 %v967, %v967
        %v1228 = vmul.f32 %v972, %v972
        %v1229 = vmul.f32 %v975, %v975
        %v1230 = vmul.f32 %v980, %v980
        %v1231 = vmul.f32 %v983, %v983
        %v1232 = vmul.f32 %v988, %v988
        %v1233 = vmul.f32 %v991, %v991
        %v1234 = vmul.f32 %v996, %v996
        %v1235 = vmul.f32 %v999, %v999
        %v1236 = vmul.f32 %v1004, %v1004
        %v1237 = vmul.f32 %v1007, %v1007
        %v1238 = vmul.f32 %v1012, %v1012
        %v1239 = vmul.f32 %v1015, %v1015
        %v1240 = vmul.f32 %v1020, %v1020
        %v1241 = vmul.f32 %v1023, %v1023
        %v1242 = vmul.f32 %v1028, %v1028
        %v1243 = vmul.f32 %v1031, %v1031
        %v1244 = vmul.f32 %v1036, %v1036
        %v1245 = vmul.f32 %v1039, %v1039
        %v1246 = vmul.f32 %v1044, %v1044
        %v1247 = vmul.f32 %v1047, %v1047
        %v1248 = vmul.f32 %v1052, %v1052
        %v1249 = vmul.f32 %v1055, %v1055
        %1250 = vadd.xlane.f32.xlu0 %v1186
        %v1251 = vpop.xlane.xlu0 %1250
        %1252 = vadd.xlane.f32.xlu0 %v1187
        %v1253 = vpop.xlane.xlu0 %1252
        %1254 = vadd.xlane.f32.xlu0 %v1188
        %v1255 = vpop.xlane.xlu0 %1254
        %1256 = vadd.xlane.f32.xlu0 %v1189
        %v1257 = vpop.xlane.xlu0 %1256
        %1258 = vadd.xlane.f32.xlu0 %v1190
        %v1259 = vpop.xlane.xlu0 %1258
        %1260 = vadd.xlane.f32.xlu0 %v1191
        %v1261 = vpop.xlane.xlu0 %1260
        %1262 = vadd.xlane.f32.xlu0 %v1192
        %v1263 = vpop.xlane.xlu0 %1262
        %1264 = vadd.xlane.f32.xlu0 %v1193
        %v1265 = vpop.xlane.xlu0 %1264
        %1266 = vadd.xlane.f32.xlu0 %v1194
        %v1267 = vpop.xlane.xlu0 %1266
        %1268 = vadd.xlane.f32.xlu0 %v1195
        %v1269 = vpop.xlane.xlu0 %1268
        %1270 = vadd.xlane.f32.xlu0 %v1196
        %v1271 = vpop.xlane.xlu0 %1270
        %1272 = vadd.xlane.f32.xlu0 %v1197
        %v1273 = vpop.xlane.xlu0 %1272
        %1274 = vadd.xlane.f32.xlu0 %v1198
        %v1275 = vpop.xlane.xlu0 %1274
        %1276 = vadd.xlane.f32.xlu0 %v1199
        %v1277 = vpop.xlane.xlu0 %1276
        %1278 = vadd.xlane.f32.xlu0 %v1200
        %v1279 = vpop.xlane.xlu0 %1278
        %1280 = vadd.xlane.f32.xlu0 %v1201
        %v1281 = vpop.xlane.xlu0 %1280
        %1282 = vadd.xlane.f32.xlu0 %v1202
        %v1283 = vpop.xlane.xlu0 %1282
        %1284 = vadd.xlane.f32.xlu0 %v1203
        %v1285 = vpop.xlane.xlu0 %1284
        %1286 = vadd.xlane.f32.xlu0 %v1204
        %v1287 = vpop.xlane.xlu0 %1286
        %1288 = vadd.xlane.f32.xlu0 %v1205
        %v1289 = vpop.xlane.xlu0 %1288
        %1290 = vadd.xlane.f32.xlu0 %v1206
        %v1291 = vpop.xlane.xlu0 %1290
        %1292 = vadd.xlane.f32.xlu0 %v1207
        %v1293 = vpop.xlane.xlu0 %1292
        %1294 = vadd.xlane.f32.xlu0 %v1208
        %v1295 = vpop.xlane.xlu0 %1294
        %1296 = vadd.xlane.f32.xlu0 %v1209
        %v1297 = vpop.xlane.xlu0 %1296
        %1298 = vadd.xlane.f32.xlu0 %v1210
        %v1299 = vpop.xlane.xlu0 %1298
        %1300 = vadd.xlane.f32.xlu0 %v1211
        %v1301 = vpop.xlane.xlu0 %1300
        %1302 = vadd.xlane.f32.xlu0 %v1212
        %v1303 = vpop.xlane.xlu0 %1302
        %1304 = vadd.xlane.f32.xlu0 %v1213
        %v1305 = vpop.xlane.xlu0 %1304
        %1306 = vadd.xlane.f32.xlu0 %v1214
        %v1307 = vpop.xlane.xlu0 %1306
        %1308 = vadd.xlane.f32.xlu0 %v1215
        %v1309 = vpop.xlane.xlu0 %1308
        %1310 = vadd.xlane.f32.xlu0 %v1216
        %v1311 = vpop.xlane.xlu0 %1310
        %1312 = vadd.xlane.f32.xlu0 %v1217
        %v1313 = vpop.xlane.xlu0 %1312
        %1314 = vadd.xlane.f32.xlu0 %v1218
        %v1315 = vpop.xlane.xlu0 %1314
        %1316 = vadd.xlane.f32.xlu0 %v1219
        %v1317 = vpop.xlane.xlu0 %1316
        %1318 = vadd.xlane.f32.xlu0 %v1220
        %v1319 = vpop.xlane.xlu0 %1318
        %1320 = vadd.xlane.f32.xlu0 %v1221
        %v1321 = vpop.xlane.xlu0 %1320
        %1322 = vadd.xlane.f32.xlu0 %v1222
        %v1323 = vpop.xlane.xlu0 %1322
        %1324 = vadd.xlane.f32.xlu0 %v1223
        %v1325 = vpop.xlane.xlu0 %1324
        %1326 = vadd.xlane.f32.xlu0 %v1224
        %v1327 = vpop.xlane.xlu0 %1326
        %1328 = vadd.xlane.f32.xlu0 %v1225
        %v1329 = vpop.xlane.xlu0 %1328
        %1330 = vadd.xlane.f32.xlu0 %v1226
        %v1331 = vpop.xlane.xlu0 %1330
        %1332 = vadd.xlane.f32.xlu0 %v1227
        %v1333 = vpop.xlane.xlu0 %1332
        %1334 = vadd.xlane.f32.xlu0 %v1228
        %v1335 = vpop.xlane.xlu0 %1334
        %1336 = vadd.xlane.f32.xlu0 %v1229
        %v1337 = vpop.xlane.xlu0 %1336
        %1338 = vadd.xlane.f32.xlu0 %v1230
        %v1339 = vpop.xlane.xlu0 %1338
        %1340 = vadd.xlane.f32.xlu0 %v1231
        %v1341 = vpop.xlane.xlu0 %1340
        %1342 = vadd.xlane.f32.xlu0 %v1232
        %v1343 = vpop.xlane.xlu0 %1342
        %1344 = vadd.xlane.f32.xlu0 %v1233
        %v1345 = vpop.xlane.xlu0 %1344
        %1346 = vadd.xlane.f32.xlu0 %v1234
        %v1347 = vpop.xlane.xlu0 %1346
        %1348 = vadd.xlane.f32.xlu0 %v1235
        %v1349 = vpop.xlane.xlu0 %1348
        %1350 = vadd.xlane.f32.xlu0 %v1236
        %v1351 = vpop.xlane.xlu0 %1350
        %1352 = vadd.xlane.f32.xlu0 %v1237
        %v1353 = vpop.xlane.xlu0 %1352
        %1354 = vadd.xlane.f32.xlu0 %v1238
        %v1355 = vpop.xlane.xlu0 %1354
        %1356 = vadd.xlane.f32.xlu0 %v1239
        %v1357 = vpop.xlane.xlu0 %1356
        %1358 = vadd.xlane.f32.xlu0 %v1240
        %v1359 = vpop.xlane.xlu0 %1358
        %1360 = vadd.xlane.f32.xlu0 %v1241
        %v1361 = vpop.xlane.xlu0 %1360
        %1362 = vadd.xlane.f32.xlu0 %v1242
        %v1363 = vpop.xlane.xlu0 %1362
        %1364 = vadd.xlane.f32.xlu0 %v1243
        %v1365 = vpop.xlane.xlu0 %1364
        %1366 = vadd.xlane.f32.xlu0 %v1244
        %v1367 = vpop.xlane.xlu0 %1366
        %1368 = vadd.xlane.f32.xlu0 %v1245
        %v1369 = vpop.xlane.xlu0 %1368
        %1370 = vadd.xlane.f32.xlu0 %v1246
        %v1371 = vpop.xlane.xlu0 %1370
        %1372 = vadd.xlane.f32.xlu0 %v1247
        %v1373 = vpop.xlane.xlu0 %1372
        %1374 = vadd.xlane.f32.xlu0 %v1248
        %v1375 = vpop.xlane.xlu0 %1374
        %1376 = vadd.xlane.f32.xlu0 %v1249
        %v1377 = vpop.xlane.xlu0 %1376
        %v1378 = vmul.f32 %v1059, 0.0078125
        %v1379 = vmul.f32 %v1061, 0.0078125
        %v1380 = vmul.f32 %v1063, 0.0078125
        %v1381 = vmul.f32 %v1065, 0.0078125
        %v1382 = vmul.f32 %v1067, 0.0078125
        %v1383 = vmul.f32 %v1069, 0.0078125
        %v1384 = vmul.f32 %v1071, 0.0078125
        %v1385 = vmul.f32 %v1073, 0.0078125
        %v1386 = vmul.f32 %v1075, 0.0078125
        %v1387 = vmul.f32 %v1077, 0.0078125
        %v1388 = vmul.f32 %v1079, 0.0078125
        %v1389 = vmul.f32 %v1081, 0.0078125
        %v1390 = vmul.f32 %v1083, 0.0078125
        %v1391 = vmul.f32 %v1085, 0.0078125
        %v1392 = vmul.f32 %v1087, 0.0078125
        %v1393 = vmul.f32 %v1089, 0.0078125
        %v1394 = vmul.f32 %v1091, 0.0078125
        %v1395 = vmul.f32 %v1093, 0.0078125
        %v1396 = vmul.f32 %v1095, 0.0078125
        %v1397 = vmul.f32 %v1097, 0.0078125
        %v1398 = vmul.f32 %v1099, 0.0078125
        %v1399 = vmul.f32 %v1101, 0.0078125
        %v1400 = vmul.f32 %v1103, 0.0078125
        %v1401 = vmul.f32 %v1105, 0.0078125
        %v1402 = vmul.f32 %v1107, 0.0078125
        %v1403 = vmul.f32 %v1109, 0.0078125
        %v1404 = vmul.f32 %v1111, 0.0078125
        %v1405 = vmul.f32 %v1113, 0.0078125
        %v1406 = vmul.f32 %v1115, 0.0078125
        %v1407 = vmul.f32 %v1117, 0.0078125
        %v1408 = vmul.f32 %v1119, 0.0078125
        %v1409 = vmul.f32 %v1121, 0.0078125
        %v1410 = vmul.f32 %v1123, 0.0078125
        %v1411 = vmul.f32 %v1125, 0.0078125
        %v1412 = vmul.f32 %v1127, 0.0078125
        %v1413 = vmul.f32 %v1129, 0.0078125
        %v1414 = vmul.f32 %v1131, 0.0078125
        %v1415 = vmul.f32 %v1133, 0.0078125
        %v1416 = vmul.f32 %v1135, 0.0078125
        %v1417 = vmul.f32 %v1137, 0.0078125
        %v1418 = vmul.f32 %v1139, 0.0078125
        %v1419 = vmul.f32 %v1141, 0.0078125
        %v1420 = vmul.f32 %v1143, 0.0078125
        %v1421 = vmul.f32 %v1145, 0.0078125
        %v1422 = vmul.f32 %v1147, 0.0078125
        %v1423 = vmul.f32 %v1149, 0.0078125
        %v1424 = vmul.f32 %v1151, 0.0078125
        %v1425 = vmul.f32 %v1153, 0.0078125
        %v1426 = vmul.f32 %v1155, 0.0078125
        %v1427 = vmul.f32 %v1157, 0.0078125
        %v1428 = vmul.f32 %v1159, 0.0078125
        %v1429 = vmul.f32 %v1161, 0.0078125
        %v1430 = vmul.f32 %v1163, 0.0078125
        %v1431 = vmul.f32 %v1165, 0.0078125
        %v1432 = vmul.f32 %v1167, 0.0078125
        %v1433 = vmul.f32 %v1169, 0.0078125
        %v1434 = vmul.f32 %v1171, 0.0078125
        %v1435 = vmul.f32 %v1173, 0.0078125
        %v1436 = vmul.f32 %v1175, 0.0078125
        %v1437 = vmul.f32 %v1177, 0.0078125
        %v1438 = vmul.f32 %v1179, 0.0078125
        %v1439 = vmul.f32 %v1181, 0.0078125
        %v1440 = vmul.f32 %v1183, 0.0078125
        %v1441 = vmul.f32 %v1185, 0.0078125
        %v1442 = vmul.f32 %v1251, 0.0078125
        %v1443 = vmul.f32 %v1253, 0.0078125
        %v1444 = vmul.f32 %v1255, 0.0078125
        %v1445 = vmul.f32 %v1257, 0.0078125
        %v1446 = vmul.f32 %v1259, 0.0078125
        %v1447 = vmul.f32 %v1261, 0.0078125
        %v1448 = vmul.f32 %v1263, 0.0078125
        %v1449 = vmul.f32 %v1265, 0.0078125
        %v1450 = vmul.f32 %v1267, 0.0078125
        %v1451 = vmul.f32 %v1269, 0.0078125
        %v1452 = vmul.f32 %v1271, 0.0078125
        %v1453 = vmul.f32 %v1273, 0.0078125
        %v1454 = vmul.f32 %v1275, 0.0078125
        %v1455 = vmul.f32 %v1277, 0.0078125
        %v1456 = vmul.f32 %v1279, 0.0078125
        %v1457 = vmul.f32 %v1281, 0.0078125
        %v1458 = vmul.f32 %v1283, 0.0078125
        %v1459 = vmul.f32 %v1285, 0.0078125
        %v1460 = vmul.f32 %v1287, 0.0078125
        %v1461 = vmul.f32 %v1289, 0.0078125
        %v1462 = vmul.f32 %v1291, 0.0078125
        %v1463 = vmul.f32 %v1293, 0.0078125
        %v1464 = vmul.f32 %v1295, 0.0078125
        %v1465 = vmul.f32 %v1297, 0.0078125
        %v1466 = vmul.f32 %v1299, 0.0078125
        %v1467 = vmul.f32 %v1301, 0.0078125
        %v1468 = vmul.f32 %v1303, 0.0078125
        %v1469 = vmul.f32 %v1305, 0.0078125
        %v1470 = vmul.f32 %v1307, 0.0078125
        %v1471 = vmul.f32 %v1309, 0.0078125
        %v1472 = vmul.f32 %v1311, 0.0078125
        %v1473 = vmul.f32 %v1313, 0.0078125
        %v1474 = vmul.f32 %v1315, 0.0078125
        %v1475 = vmul.f32 %v1317, 0.0078125
        %v1476 = vmul.f32 %v1319, 0.0078125
        %v1477 = vmul.f32 %v1321, 0.0078125
        %v1478 = vmul.f32 %v1323, 0.0078125
        %v1479 = vmul.f32 %v1325, 0.0078125
        %v1480 = vmul.f32 %v1327, 0.0078125
        %v1481 = vmul.f32 %v1329, 0.0078125
        %v1482 = vmul.f32 %v1331, 0.0078125
        %v1483 = vmul.f32 %v1333, 0.0078125
        %v1484 = vmul.f32 %v1335, 0.0078125
        %v1485 = vmul.f32 %v1337, 0.0078125
        %v1486 = vmul.f32 %v1339, 0.0078125
        %v1487 = vmul.f32 %v1341, 0.0078125
        %v1488 = vmul.f32 %v1343, 0.0078125
        %v1489 = vmul.f32 %v1345, 0.0078125
        %v1490 = vmul.f32 %v1347, 0.0078125
        %v1491 = vmul.f32 %v1349, 0.0078125
        %v1492 = vmul.f32 %v1351, 0.0078125
        %v1493 = vmul.f32 %v1353, 0.0078125
        %v1494 = vmul.f32 %v1355, 0.0078125
        %v1495 = vmul.f32 %v1357, 0.0078125
        %v1496 = vmul.f32 %v1359, 0.0078125
        %v1497 = vmul.f32 %v1361, 0.0078125
        %v1498 = vmul.f32 %v1363, 0.0078125
        %v1499 = vmul.f32 %v1365, 0.0078125
        %v1500 = vmul.f32 %v1367, 0.0078125
        %v1501 = vmul.f32 %v1369, 0.0078125
        %v1502 = vmul.f32 %v1371, 0.0078125
        %v1503 = vmul.f32 %v1373, 0.0078125
        %v1504 = vmul.f32 %v1375, 0.0078125
        %v1505 = vmul.f32 %v1377, 0.0078125
        %v1506 = vmul.f32 %v1378, %v1378
        %v1507 = vmul.f32 %v1379, %v1379
        %v1508 = vmul.f32 %v1380, %v1380
        %v1509 = vmul.f32 %v1381, %v1381
        %v1510 = vmul.f32 %v1382, %v1382
        %v1511 = vmul.f32 %v1383, %v1383
        %v1512 = vmul.f32 %v1384, %v1384
        %v1513 = vmul.f32 %v1385, %v1385
        %v1514 = vmul.f32 %v1386, %v1386
        %v1515 = vmul.f32 %v1387, %v1387
        %v1516 = vmul.f32 %v1388, %v1388
        %v1517 = vmul.f32 %v1389, %v1389
        %v1518 = vmul.f32 %v1390, %v1390
        %v1519 = vmul.f32 %v1391, %v1391
        %v1520 = vmul.f32 %v1392, %v1392
        %v1521 = vmul.f32 %v1393, %v1393
        %v1522 = vmul.f32 %v1394, %v1394
        %v1523 = vmul.f32 %v1395, %v1395
        %v1524 = vmul.f32 %v1396, %v1396
        %v1525 = vmul.f32 %v1397, %v1397
        %v1526 = vmul.f32 %v1398, %v1398
        %v1527 = vmul.f32 %v1399, %v1399
        %v1528 = vmul.f32 %v1400, %v1400
        %v1529 = vmul.f32 %v1401, %v1401
        %v1530 = vmul.f32 %v1402, %v1402
        %v1531 = vmul.f32 %v1403, %v1403
        %v1532 = vmul.f32 %v1404, %v1404
        %v1533 = vmul.f32 %v1405, %v1405
        %v1534 = vmul.f32 %v1406, %v1406
        %v1535 = vmul.f32 %v1407, %v1407
        %v1536 = vmul.f32 %v1408, %v1408
        %v1537 = vmul.f32 %v1409, %v1409
        %v1538 = vmul.f32 %v1410, %v1410
        %v1539 = vmul.f32 %v1411, %v1411
        %v1540 = vmul.f32 %v1412, %v1412
        %v1541 = vmul.f32 %v1413, %v1413
        %v1542 = vmul.f32 %v1414, %v1414
        %v1543 = vmul.f32 %v1415, %v1415
        %v1544 = vmul.f32 %v1416, %v1416
        %v1545 = vmul.f32 %v1417, %v1417
        %v1546 = vmul.f32 %v1418, %v1418
        %v1547 = vmul.f32 %v1419, %v1419
        %v1548 = vmul.f32 %v1420, %v1420
        %v1549 = vmul.f32 %v1421, %v1421
        %v1550 = vmul.f32 %v1422, %v1422
        %v1551 = vmul.f32 %v1423, %v1423
        %v1552 = vmul.f32 %v1424, %v1424
        %v1553 = vmul.f32 %v1425, %v1425
        %v1554 = vmul.f32 %v1426, %v1426
        %v1555 = vmul.f32 %v1427, %v1427
        %v1556 = vmul.f32 %v1428, %v1428
        %v1557 = vmul.f32 %v1429, %v1429
        %v1558 = vmul.f32 %v1430, %v1430
        %v1559 = vmul.f32 %v1431, %v1431
        %v1560 = vmul.f32 %v1432, %v1432
        %v1561 = vmul.f32 %v1433, %v1433
        %v1562 = vmul.f32 %v1434, %v1434
        %v1563 = vmul.f32 %v1435, %v1435
        %v1564 = vmul.f32 %v1436, %v1436
        %v1565 = vmul.f32 %v1437, %v1437
        %v1566 = vmul.f32 %v1438, %v1438
        %v1567 = vmul.f32 %v1439, %v1439
        %v1568 = vmul.f32 %v1440, %v1440
        %v1569 = vmul.f32 %v1441, %v1441
        %v1570 = vsub.f32 %v1442, %v1506
        %v1571 = vsub.f32 %v1443, %v1507
        %v1572 = vsub.f32 %v1444, %v1508
        %v1573 = vsub.f32 %v1445, %v1509
        %v1574 = vsub.f32 %v1446, %v1510
        %v1575 = vsub.f32 %v1447, %v1511
        %v1576 = vsub.f32 %v1448, %v1512
        %v1577 = vsub.f32 %v1449, %v1513
        %v1578 = vsub.f32 %v1450, %v1514
        %v1579 = vsub.f32 %v1451, %v1515
        %v1580 = vsub.f32 %v1452, %v1516
        %v1581 = vsub.f32 %v1453, %v1517
        %v1582 = vsub.f32 %v1454, %v1518
        %v1583 = vsub.f32 %v1455, %v1519
        %v1584 = vsub.f32 %v1456, %v1520
        %v1585 = vsub.f32 %v1457, %v1521
        %v1586 = vsub.f32 %v1458, %v1522
        %v1587 = vsub.f32 %v1459, %v1523
        %v1588 = vsub.f32 %v1460, %v1524
        %v1589 = vsub.f32 %v1461, %v1525
        %v1590 = vsub.f32 %v1462, %v1526
        %v1591 = vsub.f32 %v1463, %v1527
        %v1592 = vsub.f32 %v1464, %v1528
        %v1593 = vsub.f32 %v1465, %v1529
        %v1594 = vsub.f32 %v1466, %v1530
        %v1595 = vsub.f32 %v1467, %v1531
        %v1596 = vsub.f32 %v1468, %v1532
        %v1597 = vsub.f32 %v1469, %v1533
        %v1598 = vsub.f32 %v1470, %v1534
        %v1599 = vsub.f32 %v1471, %v1535
        %v1600 = vsub.f32 %v1472, %v1536
        %v1601 = vsub.f32 %v1473, %v1537
        %v1602 = vsub.f32 %v1474, %v1538
        %v1603 = vsub.f32 %v1475, %v1539
        %v1604 = vsub.f32 %v1476, %v1540
        %v1605 = vsub.f32 %v1477, %v1541
        %v1606 = vsub.f32 %v1478, %v1542
        %v1607 = vsub.f32 %v1479, %v1543
        %v1608 = vsub.f32 %v1480, %v1544
        %v1609 = vsub.f32 %v1481, %v1545
        %v1610 = vsub.f32 %v1482, %v1546
        %v1611 = vsub.f32 %v1483, %v1547
        %v1612 = vsub.f32 %v1484, %v1548
        %v1613 = vsub.f32 %v1485, %v1549
        %v1614 = vsub.f32 %v1486, %v1550
        %v1615 = vsub.f32 %v1487, %v1551
        %v1616 = vsub.f32 %v1488, %v1552
        %v1617 = vsub.f32 %v1489, %v1553
        %v1618 = vsub.f32 %v1490, %v1554
        %v1619 = vsub.f32 %v1491, %v1555
        %v1620 = vsub.f32 %v1492, %v1556
        %v1621 = vsub.f32 %v1493, %v1557
        %v1622 = vsub.f32 %v1494, %v1558
        %v1623 = vsub.f32 %v1495, %v1559
        %v1624 = vsub.f32 %v1496, %v1560
        %v1625 = vsub.f32 %v1497, %v1561
        %v1626 = vsub.f32 %v1498, %v1562
        %v1627 = vsub.f32 %v1499, %v1563
        %v1628 = vsub.f32 %v1500, %v1564
        %v1629 = vsub.f32 %v1501, %v1565
        %v1630 = vsub.f32 %v1502, %v1566
        %v1631 = vsub.f32 %v1503, %v1567
        %v1632 = vsub.f32 %v1504, %v1568
        %v1633 = vsub.f32 %v1505, %v1569
        %v1634 = vmax.f32 %v1570, 0.0
        %v1635 = vmax.f32 %v1571, 0.0
        %v1636 = vmax.f32 %v1572, 0.0
        %v1637 = vmax.f32 %v1573, 0.0
        %v1638 = vmax.f32 %v1574, 0.0
        %v1639 = vmax.f32 %v1575, 0.0
        %v1640 = vmax.f32 %v1576, 0.0
        %v1641 = vmax.f32 %v1577, 0.0
        %v1642 = vmax.f32 %v1578, 0.0
        %v1643 = vmax.f32 %v1579, 0.0
        %v1644 = vmax.f32 %v1580, 0.0
        %v1645 = vmax.f32 %v1581, 0.0
        %v1646 = vmax.f32 %v1582, 0.0
        %v1647 = vmax.f32 %v1583, 0.0
        %v1648 = vmax.f32 %v1584, 0.0
        %v1649 = vmax.f32 %v1585, 0.0
        %v1650 = vmax.f32 %v1586, 0.0
        %v1651 = vmax.f32 %v1587, 0.0
        %v1652 = vmax.f32 %v1588, 0.0
        %v1653 = vmax.f32 %v1589, 0.0
        %v1654 = vmax.f32 %v1590, 0.0
        %v1655 = vmax.f32 %v1591, 0.0
        %v1656 = vmax.f32 %v1592, 0.0
        %v1657 = vmax.f32 %v1593, 0.0
        %v1658 = vmax.f32 %v1594, 0.0
        %v1659 = vmax.f32 %v1595, 0.0
        %v1660 = vmax.f32 %v1596, 0.0
        %v1661 = vmax.f32 %v1597, 0.0
        %v1662 = vmax.f32 %v1598, 0.0
        %v1663 = vmax.f32 %v1599, 0.0
        %v1664 = vmax.f32 %v1600, 0.0
        %v1665 = vmax.f32 %v1601, 0.0
        %v1666 = vmax.f32 %v1602, 0.0
        %v1667 = vmax.f32 %v1603, 0.0
        %v1668 = vmax.f32 %v1604, 0.0
        %v1669 = vmax.f32 %v1605, 0.0
        %v1670 = vmax.f32 %v1606, 0.0
        %v1671 = vmax.f32 %v1607, 0.0
        %v1672 = vmax.f32 %v1608, 0.0
        %v1673 = vmax.f32 %v1609, 0.0
        %v1674 = vmax.f32 %v1610, 0.0
        %v1675 = vmax.f32 %v1611, 0.0
        %v1676 = vmax.f32 %v1612, 0.0
        %v1677 = vmax.f32 %v1613, 0.0
        %v1678 = vmax.f32 %v1614, 0.0
        %v1679 = vmax.f32 %v1615, 0.0
        %v1680 = vmax.f32 %v1616, 0.0
        %v1681 = vmax.f32 %v1617, 0.0
        %v1682 = vmax.f32 %v1618, 0.0
        %v1683 = vmax.f32 %v1619, 0.0
        %v1684 = vmax.f32 %v1620, 0.0
        %v1685 = vmax.f32 %v1621, 0.0
        %v1686 = vmax.f32 %v1622, 0.0
        %v1687 = vmax.f32 %v1623, 0.0
        %v1688 = vmax.f32 %v1624, 0.0
        %v1689 = vmax.f32 %v1625, 0.0
        %v1690 = vmax.f32 %v1626, 0.0
        %v1691 = vmax.f32 %v1627, 0.0
        %v1692 = vmax.f32 %v1628, 0.0
        %v1693 = vmax.f32 %v1629, 0.0
        %v1694 = vmax.f32 %v1630, 0.0
        %v1695 = vmax.f32 %v1631, 0.0
        %v1696 = vmax.f32 %v1632, 0.0
        %v1697 = vmax.f32 %v1633, 0.0
        %v1698 = vadd.f32 %v1634, 1e-05
        %v1699 = vadd.f32 %v1635, 1e-05
        %v1700 = vadd.f32 %v1636, 1e-05
        %v1701 = vadd.f32 %v1637, 1e-05
        %v1702 = vadd.f32 %v1638, 1e-05
        %v1703 = vadd.f32 %v1639, 1e-05
        %v1704 = vadd.f32 %v1640, 1e-05
        %v1705 = vadd.f32 %v1641, 1e-05
        %v1706 = vadd.f32 %v1642, 1e-05
        %v1707 = vadd.f32 %v1643, 1e-05
        %v1708 = vadd.f32 %v1644, 1e-05
        %v1709 = vadd.f32 %v1645, 1e-05
        %v1710 = vadd.f32 %v1646, 1e-05
        %v1711 = vadd.f32 %v1647, 1e-05
        %v1712 = vadd.f32 %v1648, 1e-05
        %v1713 = vadd.f32 %v1649, 1e-05
        %v1714 = vadd.f32 %v1650, 1e-05
        %v1715 = vadd.f32 %v1651, 1e-05
        %v1716 = vadd.f32 %v1652, 1e-05
        %v1717 = vadd.f32 %v1653, 1e-05
        %v1718 = vadd.f32 %v1654, 1e-05
        %v1719 = vadd.f32 %v1655, 1e-05
        %v1720 = vadd.f32 %v1656, 1e-05
        %v1721 = vadd.f32 %v1657, 1e-05
        %v1722 = vadd.f32 %v1658, 1e-05
        %v1723 = vadd.f32 %v1659, 1e-05
        %v1724 = vadd.f32 %v1660, 1e-05
        %v1725 = vadd.f32 %v1661, 1e-05
        %v1726 = vadd.f32 %v1662, 1e-05
        %v1727 = vadd.f32 %v1663, 1e-05
        %v1728 = vadd.f32 %v1664, 1e-05
        %v1729 = vadd.f32 %v1665, 1e-05
        %v1730 = vadd.f32 %v1666, 1e-05
        %v1731 = vadd.f32 %v1667, 1e-05
        %v1732 = vadd.f32 %v1668, 1e-05
        %v1733 = vadd.f32 %v1669, 1e-05
        %v1734 = vadd.f32 %v1670, 1e-05
        %v1735 = vadd.f32 %v1671, 1e-05
        %v1736 = vadd.f32 %v1672, 1e-05
        %v1737 = vadd.f32 %v1673, 1e-05
        %v1738 = vadd.f32 %v1674, 1e-05
        %v1739 = vadd.f32 %v1675, 1e-05
        %v1740 = vadd.f32 %v1676, 1e-05
        %v1741 = vadd.f32 %v1677, 1e-05
        %v1742 = vadd.f32 %v1678, 1e-05
        %v1743 = vadd.f32 %v1679, 1e-05
        %v1744 = vadd.f32 %v1680, 1e-05
        %v1745 = vadd.f32 %v1681, 1e-05
        %v1746 = vadd.f32 %v1682, 1e-05
        %v1747 = vadd.f32 %v1683, 1e-05
        %v1748 = vadd.f32 %v1684, 1e-05
        %v1749 = vadd.f32 %v1685, 1e-05
        %v1750 = vadd.f32 %v1686, 1e-05
        %v1751 = vadd.f32 %v1687, 1e-05
        %v1752 = vadd.f32 %v1688, 1e-05
        %v1753 = vadd.f32 %v1689, 1e-05
        %v1754 = vadd.f32 %v1690, 1e-05
        %v1755 = vadd.f32 %v1691, 1e-05
        %v1756 = vadd.f32 %v1692, 1e-05
        %v1757 = vadd.f32 %v1693, 1e-05
        %v1758 = vadd.f32 %v1694, 1e-05
        %v1759 = vadd.f32 %v1695, 1e-05
        %v1760 = vadd.f32 %v1696, 1e-05
        %v1761 = vadd.f32 %v1697, 1e-05
        %v1762 = vrsqrt.pop %v1698
        %v1763 = vrsqrt.pop %v1699
        %v1764 = vrsqrt.pop %v1700
        %v1765 = vrsqrt.pop %v1701
        %v1766 = vrsqrt.pop %v1702
        %v1767 = vrsqrt.pop %v1703
        %v1768 = vrsqrt.pop %v1704
        %v1769 = vrsqrt.pop %v1705
        %v1770 = vrsqrt.pop %v1706
        %v1771 = vrsqrt.pop %v1707
        %v1772 = vrsqrt.pop %v1708
        %v1773 = vrsqrt.pop %v1709
        %v1774 = vrsqrt.pop %v1710
        %v1775 = vrsqrt.pop %v1711
        %v1776 = vrsqrt.pop %v1712
        %v1777 = vrsqrt.pop %v1713
        %v1778 = vrsqrt.pop %v1714
        %v1779 = vrsqrt.pop %v1715
        %v1780 = vrsqrt.pop %v1716
        %v1781 = vrsqrt.pop %v1717
        %v1782 = vrsqrt.pop %v1718
        %v1783 = vrsqrt.pop %v1719
        %v1784 = vrsqrt.pop %v1720
        %v1785 = vrsqrt.pop %v1721
        %v1786 = vrsqrt.pop %v1722
        %v1787 = vrsqrt.pop %v1723
        %v1788 = vrsqrt.pop %v1724
        %v1789 = vrsqrt.pop %v1725
        %v1790 = vrsqrt.pop %v1726
        %v1791 = vrsqrt.pop %v1727
        %v1792 = vrsqrt.pop %v1728
        %v1793 = vrsqrt.pop %v1729
        %v1794 = vrsqrt.pop %v1730
        %v1795 = vrsqrt.pop %v1731
        %v1796 = vrsqrt.pop %v1732
        %v1797 = vrsqrt.pop %v1733
        %v1798 = vrsqrt.pop %v1734
        %v1799 = vrsqrt.pop %v1735
        %v1800 = vrsqrt.pop %v1736
        %v1801 = vrsqrt.pop %v1737
        %v1802 = vrsqrt.pop %v1738
        %v1803 = vrsqrt.pop %v1739
        %v1804 = vrsqrt.pop %v1740
        %v1805 = vrsqrt.pop %v1741
        %v1806 = vrsqrt.pop %v1742
        %v1807 = vrsqrt.pop %v1743
        %v1808 = vrsqrt.pop %v1744
        %v1809 = vrsqrt.pop %v1745
        %v1810 = vrsqrt.pop %v1746
        %v1811 = vrsqrt.pop %v1747
        %v1812 = vrsqrt.pop %v1748
        %v1813 = vrsqrt.pop %v1749
        %v1814 = vrsqrt.pop %v1750
        %v1815 = vrsqrt.pop %v1751
        %v1816 = vrsqrt.pop %v1752
        %v1817 = vrsqrt.pop %v1753
        %v1818 = vrsqrt.pop %v1754
        %v1819 = vrsqrt.pop %v1755
        %v1820 = vrsqrt.pop %v1756
        %v1821 = vrsqrt.pop %v1757
        %v1822 = vrsqrt.pop %v1758
        %v1823 = vrsqrt.pop %v1759
        %v1824 = vrsqrt.pop %v1760
        %v1825 = vrsqrt.pop %v1761
        %v1826 = vsub.f32 %v804, %v1378
        %v1827 = vsub.f32 %v807, %v1379
        %v1828 = vsub.f32 %v812, %v1380
        %v1829 = vsub.f32 %v815, %v1381
        %v1830 = vsub.f32 %v820, %v1382
        %v1831 = vsub.f32 %v823, %v1383
        %v1832 = vsub.f32 %v828, %v1384
        %v1833 = vsub.f32 %v831, %v1385
        %v1834 = vsub.f32 %v836, %v1386
        %v1835 = vsub.f32 %v839, %v1387
        %v1836 = vsub.f32 %v844, %v1388
        %v1837 = vsub.f32 %v847, %v1389
        %v1838 = vsub.f32 %v852, %v1390
        %v1839 = vsub.f32 %v855, %v1391
        %v1840 = vsub.f32 %v860, %v1392
        %v1841 = vsub.f32 %v863, %v1393
        %v1842 = vsub.f32 %v868, %v1394
        %v1843 = vsub.f32 %v871, %v1395
        %v1844 = vsub.f32 %v876, %v1396
        %v1845 = vsub.f32 %v879, %v1397
        %v1846 = vsub.f32 %v884, %v1398
        %v1847 = vsub.f32 %v887, %v1399
        %v1848 = vsub.f32 %v892, %v1400
        %v1849 = vsub.f32 %v895, %v1401
        %v1850 = vsub.f32 %v900, %v1402
        %v1851 = vsub.f32 %v903, %v1403
        %v1852 = vsub.f32 %v908, %v1404
        %v1853 = vsub.f32 %v911, %v1405
        %v1854 = vsub.f32 %v916, %v1406
        %v1855 = vsub.f32 %v919, %v1407
        %v1856 = vsub.f32 %v924, %v1408
        %v1857 = vsub.f32 %v927, %v1409
        %v1858 = vsub.f32 %v932, %v1410
        %v1859 = vsub.f32 %v935, %v1411
        %v1860 = vsub.f32 %v940, %v1412
        %v1861 = vsub.f32 %v943, %v1413
        %v1862 = vsub.f32 %v948, %v1414
        %v1863 = vsub.f32 %v951, %v1415
        %v1864 = vsub.f32 %v956, %v1416
        %v1865 = vsub.f32 %v959, %v1417
        %v1866 = vsub.f32 %v964, %v1418
        %v1867 = vsub.f32 %v967, %v1419
        %v1868 = vsub.f32 %v972, %v1420
        %v1869 = vsub.f32 %v975, %v1421
        %v1870 = vsub.f32 %v980, %v1422
        %v1871 = vsub.f32 %v983, %v1423
        %v1872 = vsub.f32 %v988, %v1424
        %v1873 = vsub.f32 %v991, %v1425
        %v1874 = vsub.f32 %v996, %v1426
        %v1875 = vsub.f32 %v999, %v1427
        %v1876 = vsub.f32 %v1004, %v1428
        %v1877 = vsub.f32 %v1007, %v1429
        %v1878 = vsub.f32 %v1012, %v1430
        %v1879 = vsub.f32 %v1015, %v1431
        %v1880 = vsub.f32 %v1020, %v1432
        %v1881 = vsub.f32 %v1023, %v1433
        %v1882 = vsub.f32 %v1028, %v1434
        %v1883 = vsub.f32 %v1031, %v1435
        %v1884 = vsub.f32 %v1036, %v1436
        %v1885 = vsub.f32 %v1039, %v1437
        %v1886 = vsub.f32 %v1044, %v1438
        %v1887 = vsub.f32 %v1047, %v1439
        %v1888 = vsub.f32 %v1052, %v1440
        %v1889 = vsub.f32 %v1055, %v1441
        %v1890 = vmul.f32 %v1826, %v1762
        %v1891 = vmul.f32 %v1827, %v1763
        %v1892 = vmul.f32 %v1828, %v1764
        %v1893 = vmul.f32 %v1829, %v1765
        %v1894 = vmul.f32 %v1830, %v1766
        %v1895 = vmul.f32 %v1831, %v1767
        %v1896 = vmul.f32 %v1832, %v1768
        %v1897 = vmul.f32 %v1833, %v1769
        %v1898 = vmul.f32 %v1834, %v1770
        %v1899 = vmul.f32 %v1835, %v1771
        %v1900 = vmul.f32 %v1836, %v1772
        %v1901 = vmul.f32 %v1837, %v1773
        %v1902 = vmul.f32 %v1838, %v1774
        %v1903 = vmul.f32 %v1839, %v1775
        %v1904 = vmul.f32 %v1840, %v1776
        %v1905 = vmul.f32 %v1841, %v1777
        %v1906 = vmul.f32 %v1842, %v1778
        %v1907 = vmul.f32 %v1843, %v1779
        %v1908 = vmul.f32 %v1844, %v1780
        %v1909 = vmul.f32 %v1845, %v1781
        %v1910 = vmul.f32 %v1846, %v1782
        %v1911 = vmul.f32 %v1847, %v1783
        %v1912 = vmul.f32 %v1848, %v1784
        %v1913 = vmul.f32 %v1849, %v1785
        %v1914 = vmul.f32 %v1850, %v1786
        %v1915 = vmul.f32 %v1851, %v1787
        %v1916 = vmul.f32 %v1852, %v1788
        %v1917 = vmul.f32 %v1853, %v1789
        %v1918 = vmul.f32 %v1854, %v1790
        %v1919 = vmul.f32 %v1855, %v1791
        %v1920 = vmul.f32 %v1856, %v1792
        %v1921 = vmul.f32 %v1857, %v1793
        %v1922 = vmul.f32 %v1858, %v1794
        %v1923 = vmul.f32 %v1859, %v1795
        %v1924 = vmul.f32 %v1860, %v1796
        %v1925 = vmul.f32 %v1861, %v1797
        %v1926 = vmul.f32 %v1862, %v1798
        %v1927 = vmul.f32 %v1863, %v1799
        %v1928 = vmul.f32 %v1864, %v1800
        %v1929 = vmul.f32 %v1865, %v1801
        %v1930 = vmul.f32 %v1866, %v1802
        %v1931 = vmul.f32 %v1867, %v1803
        %v1932 = vmul.f32 %v1868, %v1804
        %v1933 = vmul.f32 %v1869, %v1805
        %v1934 = vmul.f32 %v1870, %v1806
        %v1935 = vmul.f32 %v1871, %v1807
        %v1936 = vmul.f32 %v1872, %v1808
        %v1937 = vmul.f32 %v1873, %v1809
        %v1938 = vmul.f32 %v1874, %v1810
        %v1939 = vmul.f32 %v1875, %v1811
        %v1940 = vmul.f32 %v1876, %v1812
        %v1941 = vmul.f32 %v1877, %v1813
        %v1942 = vmul.f32 %v1878, %v1814
        %v1943 = vmul.f32 %v1879, %v1815
        %v1944 = vmul.f32 %v1880, %v1816
        %v1945 = vmul.f32 %v1881, %v1817
        %v1946 = vmul.f32 %v1882, %v1818
        %v1947 = vmul.f32 %v1883, %v1819
        %v1948 = vmul.f32 %v1884, %v1820
        %v1949 = vmul.f32 %v1885, %v1821
        %v1950 = vmul.f32 %v1886, %v1822
        %v1951 = vmul.f32 %v1887, %v1823
        %v1952 = vmul.f32 %v1888, %v1824
        %v1953 = vmul.f32 %v1889, %v1825
        %v1954 = vld [vmem:[%s3] sm:$0x1]
        %v1956 = vlaneseq
        %v1957 = vshrl.u32 %v1956, 7
        %v1958 = vsub.s32 0, %v1957
        %v1959 = vrot.slane %v1954, %v1958
        %v1961 = vmul.f32 %v1890, %v1959
        %v1962 = vmul.f32 %v1891, %v1959
        %v1963 = vmul.f32 %v1892, %v1959
        %v1964 = vmul.f32 %v1893, %v1959
        %v1965 = vmul.f32 %v1894, %v1959
        %v1966 = vmul.f32 %v1895, %v1959
        %v1967 = vmul.f32 %v1896, %v1959
        %v1968 = vmul.f32 %v1897, %v1959
        %v1969 = vmul.f32 %v1898, %v1959
        %v1970 = vmul.f32 %v1899, %v1959
        %v1971 = vmul.f32 %v1900, %v1959
        %v1972 = vmul.f32 %v1901, %v1959
        %v1973 = vmul.f32 %v1902, %v1959
        %v1974 = vmul.f32 %v1903, %v1959
        %v1975 = vmul.f32 %v1904, %v1959
        %v1976 = vmul.f32 %v1905, %v1959
        %v1977 = vmul.f32 %v1906, %v1959
        %v1978 = vmul.f32 %v1907, %v1959
        %v1979 = vmul.f32 %v1908, %v1959
        %v1980 = vmul.f32 %v1909, %v1959
        %v1981 = vmul.f32 %v1910, %v1959
        %v1982 = vmul.f32 %v1911, %v1959
        %v1983 = vmul.f32 %v1912, %v1959
        %v1984 = vmul.f32 %v1913, %v1959
        %v1985 = vmul.f32 %v1914, %v1959
        %v1986 = vmul.f32 %v1915, %v1959
        %v1987 = vmul.f32 %v1916, %v1959
        %v1988 = vmul.f32 %v1917, %v1959
        %v1989 = vmul.f32 %v1918, %v1959
        %v1990 = vmul.f32 %v1919, %v1959
        %v1991 = vmul.f32 %v1920, %v1959
        %v1992 = vmul.f32 %v1921, %v1959
        %v1993 = vmul.f32 %v1922, %v1959
        %v1994 = vmul.f32 %v1923, %v1959
        %v1995 = vmul.f32 %v1924, %v1959
        %v1996 = vmul.f32 %v1925, %v1959
        %v1997 = vmul.f32 %v1926, %v1959
        %v1998 = vmul.f32 %v1927, %v1959
        %v1999 = vmul.f32 %v1928, %v1959
        %v2000 = vmul.f32 %v1929, %v1959
        %v2001 = vmul.f32 %v1930, %v1959
        %v2002 = vmul.f32 %v1931, %v1959
        %v2003 = vmul.f32 %v1932, %v1959
        %v2004 = vmul.f32 %v1933, %v1959
        %v2005 = vmul.f32 %v1934, %v1959
        %v2006 = vmul.f32 %v1935, %v1959
        %v2007 = vmul.f32 %v1936, %v1959
        %v2008 = vmul.f32 %v1937, %v1959
        %v2009 = vmul.f32 %v1938, %v1959
        %v2010 = vmul.f32 %v1939, %v1959
        %v2011 = vmul.f32 %v1940, %v1959
        %v2012 = vmul.f32 %v1941, %v1959
        %v2013 = vmul.f32 %v1942, %v1959
        %v2014 = vmul.f32 %v1943, %v1959
        %v2015 = vmul.f32 %v1944, %v1959
        %v2016 = vmul.f32 %v1945, %v1959
        %v2017 = vmul.f32 %v1946, %v1959
        %v2018 = vmul.f32 %v1947, %v1959
        %v2019 = vmul.f32 %v1948, %v1959
        %v2020 = vmul.f32 %v1949, %v1959
        %v2021 = vmul.f32 %v1950, %v1959
        %v2022 = vmul.f32 %v1951, %v1959
        %v2023 = vmul.f32 %v1952, %v1959
        %v2024 = vmul.f32 %v1953, %v1959
        %v2025 = vld [vmem:[%s4] sm:$0x1]
        %v2027 = vlaneseq
        %v2028 = vshrl.u32 %v2027, 7
        %v2029 = vsub.s32 0, %v2028
        %v2030 = vrot.slane %v2025, %v2029
        %v2032 = vadd.f32 %v1961, %v2030
        %v2033 = vadd.f32 %v1962, %v2030
        %v2034 = vadd.f32 %v1963, %v2030
        %v2035 = vadd.f32 %v1964, %v2030
        %v2036 = vadd.f32 %v1965, %v2030
        %v2037 = vadd.f32 %v1966, %v2030
        %v2038 = vadd.f32 %v1967, %v2030
        %v2039 = vadd.f32 %v1968, %v2030
        %v2040 = vadd.f32 %v1969, %v2030
        %v2041 = vadd.f32 %v1970, %v2030
        %v2042 = vadd.f32 %v1971, %v2030
        %v2043 = vadd.f32 %v1972, %v2030
        %v2044 = vadd.f32 %v1973, %v2030
        %v2045 = vadd.f32 %v1974, %v2030
        %v2046 = vadd.f32 %v1975, %v2030
        %v2047 = vadd.f32 %v1976, %v2030
        %v2048 = vadd.f32 %v1977, %v2030
        %v2049 = vadd.f32 %v1978, %v2030
        %v2050 = vadd.f32 %v1979, %v2030
        %v2051 = vadd.f32 %v1980, %v2030
        %v2052 = vadd.f32 %v1981, %v2030
        %v2053 = vadd.f32 %v1982, %v2030
        %v2054 = vadd.f32 %v1983, %v2030
        %v2055 = vadd.f32 %v1984, %v2030
        %v2056 = vadd.f32 %v1985, %v2030
        %v2057 = vadd.f32 %v1986, %v2030
        %v2058 = vadd.f32 %v1987, %v2030
        %v2059 = vadd.f32 %v1988, %v2030
        %v2060 = vadd.f32 %v1989, %v2030
        %v2061 = vadd.f32 %v1990, %v2030
        %v2062 = vadd.f32 %v1991, %v2030
        %v2063 = vadd.f32 %v1992, %v2030
        %v2064 = vadd.f32 %v1993, %v2030
        %v2065 = vadd.f32 %v1994, %v2030
        %v2066 = vadd.f32 %v1995, %v2030
        %v2067 = vadd.f32 %v1996, %v2030
        %v2068 = vadd.f32 %v1997, %v2030
        %v2069 = vadd.f32 %v1998, %v2030
        %v2070 = vadd.f32 %v1999, %v2030
        %v2071 = vadd.f32 %v2000, %v2030
        %v2072 = vadd.f32 %v2001, %v2030
        %v2073 = vadd.f32 %v2002, %v2030
        %v2074 = vadd.f32 %v2003, %v2030
        %v2075 = vadd.f32 %v2004, %v2030
        %v2076 = vadd.f32 %v2005, %v2030
        %v2077 = vadd.f32 %v2006, %v2030
        %v2078 = vadd.f32 %v2007, %v2030
        %v2079 = vadd.f32 %v2008, %v2030
        %v2080 = vadd.f32 %v2009, %v2030
        %v2081 = vadd.f32 %v2010, %v2030
        %v2082 = vadd.f32 %v2011, %v2030
        %v2083 = vadd.f32 %v2012, %v2030
        %v2084 = vadd.f32 %v2013, %v2030
        %v2085 = vadd.f32 %v2014, %v2030
        %v2086 = vadd.f32 %v2015, %v2030
        %v2087 = vadd.f32 %v2016, %v2030
        %v2088 = vadd.f32 %v2017, %v2030
        %v2089 = vadd.f32 %v2018, %v2030
        %v2090 = vadd.f32 %v2019, %v2030
        %v2091 = vadd.f32 %v2020, %v2030
        %v2092 = vadd.f32 %v2021, %v2030
        %v2093 = vadd.f32 %v2022, %v2030
        %v2094 = vadd.f32 %v2023, %v2030
        %v2095 = vadd.f32 %v2024, %v2030
        %2096 = vst [vmem:[%s220] sm:$0xff] %v2032
        %2097 = vst [vmem:[%s220 + $0x8] sm:$0xff] %v2033
        %2098 = vst [vmem:[%s220 + $0x10] sm:$0xff] %v2034
        %2099 = vst [vmem:[%s220 + $0x18] sm:$0xff] %v2035
        %2100 = vst [vmem:[%s220 + $0x20] sm:$0xff] %v2036
        %2101 = vst [vmem:[%s220 + $0x28] sm:$0xff] %v2037
        %2102 = vst [vmem:[%s220 + $0x30] sm:$0xff] %v2038
        %2103 = vst [vmem:[%s220 + $0x38] sm:$0xff] %v2039
        %2104 = vst [vmem:[%s220 + $0x40] sm:$0xff] %v2040
        %2105 = vst [vmem:[%s220 + $0x48] sm:$0xff] %v2041
        %2106 = vst [vmem:[%s220 + $0x50] sm:$0xff] %v2042
        %2107 = vst [vmem:[%s220 + $0x58] sm:$0xff] %v2043
        %2108 = vst [vmem:[%s220 + $0x60] sm:$0xff] %v2044
        %2109 = vst [vmem:[%s220 + $0x68] sm:$0xff] %v2045
        %2110 = vst [vmem:[%s220 + $0x70] sm:$0xff] %v2046
        %2111 = vst [vmem:[%s220 + $0x78] sm:$0xff] %v2047
        %2112 = vst [vmem:[%s220 + $0x80] sm:$0xff] %v2048
        %2113 = vst [vmem:[%s220 + $0x88] sm:$0xff] %v2049
        %2114 = vst [vmem:[%s220 + $0x90] sm:$0xff] %v2050
        %2115 = vst [vmem:[%s220 + $0x98] sm:$0xff] %v2051
        %2116 = vst [vmem:[%s220 + $0xa0] sm:$0xff] %v2052
        %2117 = vst [vmem:[%s220 + $0xa8] sm:$0xff] %v2053
        %2118 = vst [vmem:[%s220 + $0xb0] sm:$0xff] %v2054
        %2119 = vst [vmem:[%s220 + $0xb8] sm:$0xff] %v2055
        %2120 = vst [vmem:[%s220 + $0xc0] sm:$0xff] %v2056
        %2121 = vst [vmem:[%s220 + $0xc8] sm:$0xff] %v2057
        %2122 = vst [vmem:[%s220 + $0xd0] sm:$0xff] %v2058
        %2123 = vst [vmem:[%s220 + $0xd8] sm:$0xff] %v2059
        %2124 = vst [vmem:[%s220 + $0xe0] sm:$0xff] %v2060
        %2125 = vst [vmem:[%s220 + $0xe8] sm:$0xff] %v2061
        %2126 = vst [vmem:[%s220 + $0xf0] sm:$0xff] %v2062
        %2127 = vst [vmem:[%s220 + $0xf8] sm:$0xff] %v2063
        %2128 = vst [vmem:[%s220 + $0x100] sm:$0xff] %v2064
        %2129 = vst [vmem:[%s220 + $0x108] sm:$0xff] %v2065
        %2130 = vst [vmem:[%s220 + $0x110] sm:$0xff] %v2066
        %2131 = vst [vmem:[%s220 + $0x118] sm:$0xff] %v2067
        %2132 = vst [vmem:[%s220 + $0x120] sm:$0xff] %v2068
        %2133 = vst [vmem:[%s220 + $0x128] sm:$0xff] %v2069
        %2134 = vst [vmem:[%s220 + $0x130] sm:$0xff] %v2070
        %2135 = vst [vmem:[%s220 + $0x138] sm:$0xff] %v2071
        %2136 = vst [vmem:[%s220 + $0x140] sm:$0xff] %v2072
        %2137 = vst [vmem:[%s220 + $0x148] sm:$0xff] %v2073
        %2138 = vst [vmem:[%s220 + $0x150] sm:$0xff] %v2074
        %2139 = vst [vmem:[%s220 + $0x158] sm:$0xff] %v2075
        %2140 = vst [vmem:[%s220 + $0x160] sm:$0xff] %v2076
        %2141 = vst [vmem:[%s220 + $0x168] sm:$0xff] %v2077
        %2142 = vst [vmem:[%s220 + $0x170] sm:$0xff] %v2078
        %2143 = vst [vmem:[%s220 + $0x178] sm:$0xff] %v2079
        %2144 = vst [vmem:[%s220 + $0x180] sm:$0xff] %v2080
        %2145 = vst [vmem:[%s220 + $0x188] sm:$0xff] %v2081
        %2146 = vst [vmem:[%s220 + $0x190] sm:$0xff] %v2082
        %2147 = vst [vmem:[%s220 + $0x198] sm:$0xff] %v2083
        %2148 = vst [vmem:[%s220 + $0x1a0] sm:$0xff] %v2084
        %2149 = vst [vmem:[%s220 + $0x1a8] sm:$0xff] %v2085
        %2150 = vst [vmem:[%s220 + $0x1b0] sm:$0xff] %v2086
        %2151 = vst [vmem:[%s220 + $0x1b8] sm:$0xff] %v2087
        %2152 = vst [vmem:[%s220 + $0x1c0] sm:$0xff] %v2088
        %2153 = vst [vmem:[%s220 + $0x1c8] sm:$0xff] %v2089
        %2154 = vst [vmem:[%s220 + $0x1d0] sm:$0xff] %v2090
        %2155 = vst [vmem:[%s220 + $0x1d8] sm:$0xff] %v2091
        %2156 = vst [vmem:[%s220 + $0x1e0] sm:$0xff] %v2092
        %2157 = vst [vmem:[%s220 + $0x1e8] sm:$0xff] %v2093
        %2158 = vst [vmem:[%s220 + $0x1f0] sm:$0xff] %v2094
        %2159 = vst [vmem:[%s220 + $0x1f8] sm:$0xff] %v2095
        %s2160 = sand.u32 %s137, 1
        %s2161 = scalar_lea.sflag [#allocation3], %s2160
        %s2162 = sand.u32 %s137, 1
        %s2163 = smul.addr %s2162, 512
        %s2164 = scalar_lea.vmem [#allocation2], %s2163
        // Predicated region
        $region41: #{tpu_custom_call.1} parent=39 // pred_check
          %p2165 = pneg %p147
        $region42: #{tpu_custom_call.1} parent=39 // pred_check_branch
          %2167 = sbr.rel (%p2165) target = $region44
        $region43: #{tpu_custom_call.1} parent=39 // pred_region
          %s2168 = smul.u32 64, %s19
          %s2170 = ssub.s32 8192, 8192
          %2171 = vsyncadd %s2161, %s2170
          %s2172 = smul.addr %s2168, 128
          %s2173 = scalar_lea.hbm %s5, %s2172
          %s2174 = sshll.u32 %s2164, 4
          %s2175 = int_to_ptr.vmem [resolvable:$true] %s2174
          %2180 = dma.vmem_to_hbm [thread:$0]  %s2175, 8192, %s2173, %s2161, 128, 128, 8
        $region44: #{tpu_custom_call.1} parent=39 // pred_fallthru
          _
      $region40: #{tpu_custom_call.1} parent=5 // pred_fallthru
        _
      %p2181 = scmp.le.s32.totalorder 2, %s14
      // Predicated region
      $region45: #{tpu_custom_call.1} parent=5 // pred_check
        %p2182 = pneg %p2181
      $region46: #{tpu_custom_call.1} parent=5 // pred_check_branch
        %2184 = sbr.rel (%p2182) target = $region48
      $region47: #{tpu_custom_call.1} parent=5 // pred_region
        %s2185 = ssub.s32 %s14, 2
        // Predicated region
        $region49: #{tpu_custom_call.1} parent=47 // pred_check
          %p2186 = pneg %p153
        $region50: #{tpu_custom_call.1} parent=47 // pred_check_branch
          %2188 = sbr.rel (%p2186) target = $region52
        $region51: #{tpu_custom_call.1} parent=47 // pred_region
          %s2189 = sand.u32 %s138, 1
          %s2190 = scalar_lea.sflag [#allocation3], %s2189
          %s2191 = sand.u32 %s138, 1
          %s2192 = smul.addr %s2191, 512
          %s2193 = scalar_lea.vmem [#allocation2], %s2192
          %2194 = dma.done %s2190, 8192
        $region52: #{tpu_custom_call.1} parent=47 // pred_fallthru
          _
      $region48: #{tpu_custom_call.1} parent=5 // pred_fallthru
        _
    $region6: #{tpu_custom_call.1} parent=1 // loop_footer
      %s18 = sadd.s32 1, %s14
    $region7: #{tpu_custom_call.1} parent=1 // loop_footer_branch
      %13 = sbr.rel target = $region3
    $region8: #{tpu_custom_call.1} parent=1 // loop_exit
      _
    %2195 = vsyncpa [#allocation3], 1
    %s2196 = scalar_lea.sflag [#allocation3], 1
    %2197 = vsyncpa %s2196, 1

</llo_original>
